<compile_context>
chip_gen: v5e
topology: v5e:2x2
jax: 0.10.0
libtpu: 0.0.40
codegen_flags: <defaults>
</compile_context>

<pallas_src>
import jax
import jax.numpy as jnp
from jax.experimental import pallas as pl
from jax.experimental.pallas import tpu as pltpu


# --------------------------------------------------------------------------- MXU dtype

def _pick_mxu_dtype():
    """bf16 MXU feeds on v6e/v7x (full-rate bf16 MXU); f32 elsewhere. f32 accumulate."""
    try:
        kind = jax.devices()[0].device_kind.lower()
    except Exception:
        return jnp.float32
    if "v6" in kind or "v7" in kind or "7x" in kind:
        return jnp.bfloat16
    return jnp.float32


MXU_DTYPE = _pick_mxu_dtype()


def _mm(a, b):
    """MXU matmul with f32 accumulation; operands cast to the chip-preferred feed dtype."""
    return jnp.dot(a.astype(MXU_DTYPE), b.astype(MXU_DTYPE),
                   preferred_element_type=jnp.float32)


# ------------------------------------------------------------------ fused branch kernel

def _branches_kernel(adjm_ref, xm43_ref, sb_ref, maskm_ref,
                     adjp_ref, xp_ref, maskp_ref,
                     w1_ref, b1_ref, w2h_ref, w2b_ref, b2_ref,
                     woh_ref, wob_ref, bo_ref,
                     wp1_ref, bp1_ref, wp2_ref, bp2_ref, wpo_ref, bpo_ref,
                     fpm_ref, fpp_ref):
    """Molecule + protein graph branches for TB batch samples folded into one block."""
    # ---------------- molecule branch: TB samples as one block-diagonal graph ----------
    adj = adjm_ref[0]            # (TB*Nm, TB*Nm) block-diag neighbor multiplicity
    sb = sb_ref[0]               # (TB*Nm, Fb)    bond features pre-summed over neighbors

    # GraphConv 1: input [agg_atoms ; sum_bonds] was pre-built in the wrapper -> one dot.
    h1 = jnp.maximum(_mm(xm43_ref[0], w1_ref[...]) + b1_ref[...], 0.0)

    # GraphConv 2: neighbor aggregation is a single block-diag MXU push; the
    # [h ; sum_bonds] concat is folded by splitting the weight.
    agg2 = _mm(adj, h1) + h1
    h2 = jnp.maximum(
        _mm(agg2, w2h_ref[...]) + _mm(sb, w2b_ref[...]) + b2_ref[...], 0.0)

    # GraphOutput: tanh(Linear([h2 ; sum_bonds])); the per-sample masked sum is a
    # block-diagonal (TB, TB*Nm) mask matmul -> (TB, Dm) written once per tile.
    g = jnp.tanh(_mm(h2, woh_ref[...]) + _mm(sb, wob_ref[...]) + bo_ref[...])
    fpm_ref[0] = _mm(maskm_ref[0], g)

    # ---------------- protein branch ----------------------------------------------------
    adjp = adjp_ref[0]           # (TB*Np, TB*Np)
    g1 = jnp.maximum(_mm(xp_ref[0], wp1_ref[...]) + bp1_ref[...], 0.0)
    agg2p = _mm(adjp, g1) + g1
    g2 = jnp.maximum(_mm(agg2p, wp2_ref[...]) + bp2_ref[...], 0.0)
    gp = jnp.tanh(_mm(g2, wpo_ref[...]) + bpo_ref[...])
    fpp_ref[0] = _mm(maskp_ref[0], gp)


def fused_branches(adjm_bd, xm43_t, sb_t, maskm_bd,
                   adjp_bd, xp_t, maskp_bd, mol_params, pro_params):
    """All per-tile arrays are (T, rows, cols); grid iterates over T batch tiles."""
    T = adjm_bd.shape[0]
    TB = maskm_bd.shape[1]
    (w1, b1), (w2h, w2b, b2), (woh, wob, bo) = mol_params
    (wp1, bp1), (wp2, bp2), (wpo, bpo) = pro_params
    Dm, Dp = woh.shape[1], wpo.shape[1]

    def tile_spec(arr):
        return pl.BlockSpec((1,) + arr.shape[1:], lambda t: (t, 0, 0))

    def const_spec(arr):
        # Constant across grid steps; weights are tiny so default buffering is fine.
        return pl.BlockSpec(arr.shape, lambda t: (0, 0))

    tiles = [adjm_bd, xm43_t, sb_t, maskm_bd, adjp_bd, xp_t, maskp_bd]
    consts = [w1, b1, w2h, w2b, b2, woh, wob, bo, wp1, bp1, wp2, bp2, wpo, bpo]

    fpm, fpp = pl.pallas_call(
        _branches_kernel,
        out_shape=(jax.ShapeDtypeStruct((T, TB, Dm), jnp.float32),
                   jax.ShapeDtypeStruct((T, TB, Dp), jnp.float32)),
        grid=(T,),
        in_specs=[tile_spec(a) for a in tiles] + [const_spec(a) for a in consts],
        out_specs=(pl.BlockSpec((1, TB, Dm), lambda t: (t, 0, 0)),
                   pl.BlockSpec((1, TB, Dp), lambda t: (t, 0, 0))),
        compiler_params=pltpu.CompilerParams(dimension_semantics=("parallel",)),
    )(*tiles, *consts)
    return fpm.reshape(T * TB, Dm), fpp.reshape(T * TB, Dp)


# ------------------------------------------------------ cheap JAX-side graph preprocessing

def _pick_tb(batch, n_nodes, target_rows=256):
    """Largest batch-fold TB dividing B with TB*N <= ~256 rows and >= 2 grid steps."""
    if batch <= 1:
        return 1
    target = max(1, target_rows // max(n_nodes, 1))
    best = 1
    for tb in range(1, batch // 2 + 1):       # keep >= 2 grid steps (both v7x cores busy)
        if batch % tb == 0 and tb <= target:
            best = tb
    return best


def _edges_to_adjacency(edges, n_nodes):
    """Edge index list (B, N, D) with -1 padding -> dense multiplicity adjacency (B, N, N).
    Built with a scatter-add; no (B, N, D, N) one-hot intermediate in HBM."""
    B, N, D = edges.shape
    valid = (edges >= 0).astype(jnp.float32)
    idx = jnp.clip(edges, 0, n_nodes - 1)
    b_ix = jnp.broadcast_to(jnp.arange(B)[:, None, None], (B, N, D))
    r_ix = jnp.broadcast_to(jnp.arange(N)[None, :, None], (B, N, D))
    adj = jnp.zeros((B, N, n_nodes), jnp.float32)
    return adj.at[b_ix, r_ix, idx].add(valid)


def _block_diag_adj(adj, tb):
    """(B, N, N) per-sample adjacency -> (T, TB*N, TB*N) block-diagonal tiles."""
    B, N, _ = adj.shape
    T = B // tb
    a = adj.reshape(T, tb, N, N)
    eye = jnp.eye(tb, dtype=adj.dtype)
    bd = a[:, :, :, None, :] * eye[None, :, None, :, None]   # (T, TB, N, TB, N)
    return bd.reshape(T, tb * N, tb * N)


def _block_diag_mask(mask, tb):
    """(B, N) per-node mask -> (T, TB, TB*N) block-diagonal fingerprint-sum matrix."""
    B, N = mask.shape
    T = B // tb
    m = mask.reshape(T, tb, N)
    eye = jnp.eye(tb, dtype=mask.dtype)
    bd = m[:, :, None, :] * eye[None, :, :, None]             # (T, TB, TB, N)
    return bd.reshape(T, tb, tb * N)


def gcn_forward(params, m_atoms, m_bonds, m_edges, p_atoms, p_edges):
    B, Nm, Fa = m_atoms.shape
    Np, Fp = p_atoms.shape[1], p_atoms.shape[2]
    Fb = m_bonds.shape[-1]

    TB = _pick_tb(B, max(Nm, Np))
    T = B // TB

    # ---- molecule/protein graph prep (tiny, XLA-fused) --------------------------------
    adj_m = _edges_to_adjacency(m_edges, Nm)                       # (B, Nm, Nm)
    sbonds = jnp.sum(m_bonds, axis=2)                              # (B, Nm, Fb)
    deg_m = jnp.sum((m_edges >= 0).astype(jnp.float32), axis=-1)   # (B, Nm)
    mask_m = (deg_m > 0).astype(jnp.float32)
    # TODO(synk): masking by degree drops isolated-but-real atoms; reference NGFP masks on
    # atom padding — verify once the GraphOutput source is available.
    mask_p = (jnp.sum(p_edges, axis=-1) > 0).astype(jnp.float32)   # (B, Np)

    # First-layer inputs pre-aggregated (+ pre-concatenated for the molecule branch) so
    # GraphConv1 / GraphConv_p1 are a single MXU dot inside the kernel.
    agg1_m = jnp.einsum('bij,bjf->bif', adj_m, m_atoms) + m_atoms
    xm43 = jnp.concatenate([agg1_m, sbonds], axis=-1)              # (B, Nm, 43)
    xp_agg = jnp.einsum('bij,bjf->bif', p_edges, p_atoms) + p_atoms

    # ---- fold TB samples per grid step: block-diagonal adjacency / fingerprint mask ----
    adjm_bd = _block_diag_adj(adj_m, TB)                           # (T, TB*Nm, TB*Nm)
    adjp_bd = _block_diag_adj(p_edges, TB)                         # (T, TB*Np, TB*Np)
    maskm_bd = _block_diag_mask(mask_m, TB)                        # (T, TB, TB*Nm)
    maskp_bd = _block_diag_mask(mask_p, TB)                        # (T, TB, TB*Np)
    xm43_t = xm43.reshape(T, TB * Nm, Fa + Fb)
    sb_t = sbonds.reshape(T, TB * Nm, Fb)
    xp_t = xp_agg.reshape(T, TB * Np, Fp)

    # split concat-weights whose 128-wide operand is produced in-kernel
    w1, b1 = params["gcn_mol_1"]
    w2, b2 = params["gcn_mol_2"]
    wo, bo = params["gop"]
    wp1, bp1 = params["gcn_pro_1"]
    wp2, bp2 = params["gcn_pro_2"]
    wpo, bpo = params["gop_p"]
    c1, c2 = w1.shape[1], w2.shape[1]
    mol_params = ((w1, b1.reshape(1, -1)),
                  (w2[:c1], w2[c1:], b2.reshape(1, -1)),
                  (wo[:c2], wo[c2:], bo.reshape(1, -1)))
    pro_params = ((wp1, bp1.reshape(1, -1)),
                  (wp2, bp2.reshape(1, -1)),
                  (wpo, bpo.reshape(1, -1)))

    fp_m, fp_p = fused_branches(adjm_bd, xm43_t, sb_t, maskm_bd,
                                adjp_bd, xp_t, maskp_bd, mol_params, pro_params)

    # ---- FC head in plain jnp (XLA fuses 3 tiny GEMMs + sigmoid; a pallas_call here was
    # pure launch overhead).  Matches the reference: no nonlinearity between FC layers.
    wf1, bf1 = params["FC_layer_1"]
    wf2, bf2 = params["FC_layer_2"]
    wf3, bf3 = params["output_layer"]
    fp = jnp.concatenate([fp_m, fp_p], axis=1)
    h = fp @ wf1 + bf1
    h = h @ wf2 + bf2
    return jax.nn.sigmoid(h @ wf3 + bf3)


# ------------------------------------------------------------------------------ params

def _linear_params(key, in_dim, out_dim):
    kw, kb = jax.random.split(key)
    bound = 1.0 / jnp.sqrt(jnp.float32(in_dim))
    w = jax.random.uniform(kw, (in_dim, out_dim), jnp.float32, -bound, bound)
    b = jax.random.uniform(kb, (out_dim,), jnp.float32, -bound, bound)
    return w, b


def init_params(key, hid_dim_m, hid_dim_p, n_class):
    keys = jax.random.split(key, 9)
    return {
        "gcn_mol_1": _linear_params(keys[0], 43, 128),
        "gcn_mol_2": _linear_params(keys[1], 134, 128),
        "gcn_pro_1": _linear_params(keys[2], 480, 200),
        "gcn_pro_2": _linear_params(keys[3], 200, 100),
        "gop": _linear_params(keys[4], 134, hid_dim_m),
        "gop_p": _linear_params(keys[5], 100, hid_dim_p),
        "FC_layer_1": _linear_params(keys[6], hid_dim_m + hid_dim_p, 100),
        "FC_layer_2": _linear_params(keys[7], 100, 100),
        "output_layer": _linear_params(keys[8], 100, n_class),
    }


# -------------------------------------------------------------------------------- main

if __name__ == "__main__":
    B, Nm, D, Fa, Fb = 4, 8, 4, 37, 6       # B=4 exercises the TB=2 batch-fold path
    Np, Fp = 8, 480
    hid_dim_m, hid_dim_p, n_class = 32, 32, 2

    root = jax.random.PRNGKey(0)
    k_par, k_ma, k_mb, k_me, k_pa, k_pe = jax.random.split(root, 6)

    params = init_params(k_par, hid_dim_m, hid_dim_p, n_class)

    m_atoms = jax.random.normal(k_ma, (B, Nm, Fa), jnp.float32)
    m_bonds = jax.random.normal(k_mb, (B, Nm, D, Fb), jnp.float32)
    m_edges = jax.random.randint(k_me, (B, Nm, D), -1, Nm).astype(jnp.int32)
    p_atoms = jax.random.normal(k_pa, (B, Np, Fp), jnp.float32)
    p_edges = (jax.random.uniform(k_pe, (B, Np, Np)) > 0.5).astype(jnp.float32)

    fwd = jax.jit(gcn_forward)
    out = jax.block_until_ready(fwd(params, m_atoms, m_bonds, m_edges, p_atoms, p_edges))

    assert out.shape == (B, n_class)
    assert bool(jnp.all(jnp.isfinite(out)))
    assert bool(jnp.all((out >= 0.0) & (out <= 1.0)))
    print("KERNEL_OK")
</pallas_src>

<mosaic_0001>
module attributes {stable_mosaic.version = 11 : i64} {
  func.func @_branches_kernel(%arg0: i32, %arg1: memref<1x16x16xf32, #tpu.memory_space<vmem>>, %arg2: memref<1x16x43xf32, #tpu.memory_space<vmem>>, %arg3: memref<1x16x6xf32, #tpu.memory_space<vmem>>, %arg4: memref<1x2x16xf32, #tpu.memory_space<vmem>>, %arg5: memref<1x16x16xf32, #tpu.memory_space<vmem>>, %arg6: memref<1x16x480xf32, #tpu.memory_space<vmem>>, %arg7: memref<1x2x16xf32, #tpu.memory_space<vmem>>, %arg8: memref<43x128xf32, #tpu.memory_space<vmem>>, %arg9: memref<1x128xf32, #tpu.memory_space<vmem>>, %arg10: memref<128x128xf32, #tpu.memory_space<vmem>>, %arg11: memref<6x128xf32, #tpu.memory_space<vmem>>, %arg12: memref<1x128xf32, #tpu.memory_space<vmem>>, %arg13: memref<128x32xf32, #tpu.memory_space<vmem>>, %arg14: memref<6x32xf32, #tpu.memory_space<vmem>>, %arg15: memref<1x32xf32, #tpu.memory_space<vmem>>, %arg16: memref<480x200xf32, #tpu.memory_space<vmem>>, %arg17: memref<1x200xf32, #tpu.memory_space<vmem>>, %arg18: memref<200x100xf32, #tpu.memory_space<vmem>>, %arg19: memref<1x100xf32, #tpu.memory_space<vmem>>, %arg20: memref<100x32xf32, #tpu.memory_space<vmem>>, %arg21: memref<1x32xf32, #tpu.memory_space<vmem>>, %arg22: memref<1x2x32xf32, #tpu.memory_space<vmem>>, %arg23: memref<1x2x32xf32, #tpu.memory_space<vmem>>) attributes {dimension_semantics = [#tpu.dimension_semantics<parallel>], iteration_bounds = array<i64: 2>, scalar_prefetch = 0 : i64, scratch_operands = 0 : i64, tpu.core_type = #tpu.core_type<tc>, window_params = [{transform_indices = @transform_0, window_bounds = array<i64: 1, 16, 16>}, {transform_indices = @transform_1, window_bounds = array<i64: 1, 16, 43>}, {transform_indices = @transform_2, window_bounds = array<i64: 1, 16, 6>}, {transform_indices = @transform_3, window_bounds = array<i64: 1, 2, 16>}, {transform_indices = @transform_4, window_bounds = array<i64: 1, 16, 16>}, {transform_indices = @transform_5, window_bounds = array<i64: 1, 16, 480>}, {transform_indices = @transform_6, window_bounds = array<i64: 1, 2, 16>}, {pipeline_mode = #tpu.pipeline_mode<synchronous>, transform_indices = @transform_7, window_bounds = array<i64: 43, 128>}, {pipeline_mode = #tpu.pipeline_mode<synchronous>, transform_indices = @transform_8, window_bounds = array<i64: 1, 128>}, {pipeline_mode = #tpu.pipeline_mode<synchronous>, transform_indices = @transform_9, window_bounds = array<i64: 128, 128>}, {pipeline_mode = #tpu.pipeline_mode<synchronous>, transform_indices = @transform_10, window_bounds = array<i64: 6, 128>}, {pipeline_mode = #tpu.pipeline_mode<synchronous>, transform_indices = @transform_11, window_bounds = array<i64: 1, 128>}, {pipeline_mode = #tpu.pipeline_mode<synchronous>, transform_indices = @transform_12, window_bounds = array<i64: 128, 32>}, {pipeline_mode = #tpu.pipeline_mode<synchronous>, transform_indices = @transform_13, window_bounds = array<i64: 6, 32>}, {pipeline_mode = #tpu.pipeline_mode<synchronous>, transform_indices = @transform_14, window_bounds = array<i64: 1, 32>}, {pipeline_mode = #tpu.pipeline_mode<synchronous>, transform_indices = @transform_15, window_bounds = array<i64: 480, 200>}, {pipeline_mode = #tpu.pipeline_mode<synchronous>, transform_indices = @transform_16, window_bounds = array<i64: 1, 200>}, {pipeline_mode = #tpu.pipeline_mode<synchronous>, transform_indices = @transform_17, window_bounds = array<i64: 200, 100>}, {pipeline_mode = #tpu.pipeline_mode<synchronous>, transform_indices = @transform_18, window_bounds = array<i64: 1, 100>}, {pipeline_mode = #tpu.pipeline_mode<synchronous>, transform_indices = @transform_19, window_bounds = array<i64: 100, 32>}, {pipeline_mode = #tpu.pipeline_mode<synchronous>, transform_indices = @transform_20, window_bounds = array<i64: 1, 32>}, {transform_indices = @transform_21, window_bounds = array<i64: 1, 2, 32>}, {transform_indices = @transform_22, window_bounds = array<i64: 1, 2, 32>}]} {
    %c0 = arith.constant 0 : index
    %c0_0 = arith.constant 0 : index
    %c0_1 = arith.constant 0 : index
    %0 = vector.load %arg1[%c0, %c0_0, %c0_1] : memref<1x16x16xf32, #tpu.memory_space<vmem>>, vector<1x16x16xf32>
    %1 = vector.shape_cast %0 : vector<1x16x16xf32> to vector<16x16xf32>
    %c0_2 = arith.constant 0 : index
    %c0_3 = arith.constant 0 : index
    %c0_4 = arith.constant 0 : index
    %2 = vector.load %arg3[%c0_2, %c0_3, %c0_4] : memref<1x16x6xf32, #tpu.memory_space<vmem>>, vector<1x16x6xf32>
    %3 = vector.shape_cast %2 : vector<1x16x6xf32> to vector<16x6xf32>
    %c0_5 = arith.constant 0 : index
    %c0_6 = arith.constant 0 : index
    %c0_7 = arith.constant 0 : index
    %4 = vector.load %arg2[%c0_5, %c0_6, %c0_7] : memref<1x16x43xf32, #tpu.memory_space<vmem>>, vector<1x16x43xf32>
    %5 = vector.shape_cast %4 : vector<1x16x43xf32> to vector<16x43xf32>
    %c0_8 = arith.constant 0 : index
    %c0_9 = arith.constant 0 : index
    %6 = vector.load %arg8[%c0_8, %c0_9] : memref<43x128xf32, #tpu.memory_space<vmem>>, vector<43x128xf32>
    %cst = arith.constant dense<0.000000e+00> : vector<16x128xf32>
    %7 = tpu.matmul %5, %6, %cst {dimension_numbers = #tpu.dot_dimension_numbers<[1], [0], [0], [1], [0, 0, 1, 1], [], []>} : vector<16x43xf32>, vector<43x128xf32>, vector<16x128xf32> -> vector<16x128xf32>
    %c0_10 = arith.constant 0 : index
    %c0_11 = arith.constant 0 : index
    %8 = vector.load %arg9[%c0_10, %c0_11] : memref<1x128xf32, #tpu.memory_space<vmem>>, vector<1x128xf32>
    %9 = vector.broadcast %8 : vector<1x128xf32> to vector<16x128xf32>
    %10 = arith.addf %7, %9 : vector<16x128xf32>
    %cst_12 = arith.constant 0.000000e+00 : f32
    %11 = vector.broadcast %cst_12 : f32 to vector<16x128xf32>
    %12 = arith.maximumf %10, %11 : vector<16x128xf32>
    %cst_13 = arith.constant dense<0.000000e+00> : vector<16x128xf32>
    %13 = tpu.matmul %1, %12, %cst_13 {dimension_numbers = #tpu.dot_dimension_numbers<[1], [0], [0], [1], [0, 0, 1, 1], [], []>} : vector<16x16xf32>, vector<16x128xf32>, vector<16x128xf32> -> vector<16x128xf32>
    %14 = arith.addf %13, %12 : vector<16x128xf32>
    %c0_14 = arith.constant 0 : index
    %c0_15 = arith.constant 0 : index
    %15 = vector.load %arg10[%c0_14, %c0_15] : memref<128x128xf32, #tpu.memory_space<vmem>>, vector<128x128xf32>
    %cst_16 = arith.constant dense<0.000000e+00> : vector<16x128xf32>
    %16 = tpu.matmul %14, %15, %cst_16 {dimension_numbers = #tpu.dot_dimension_numbers<[1], [0], [0], [1], [0, 0, 1, 1], [], []>} : vector<16x128xf32>, vector<128x128xf32>, vector<16x128xf32> -> vector<16x128xf32>
    %c0_17 = arith.constant 0 : index
    %c0_18 = arith.constant 0 : index
    %17 = vector.load %arg11[%c0_17, %c0_18] : memref<6x128xf32, #tpu.memory_space<vmem>>, vector<6x128xf32>
    %cst_19 = arith.constant dense<0.000000e+00> : vector<16x128xf32>
    %18 = tpu.matmul %3, %17, %cst_19 {dimension_numbers = #tpu.dot_dimension_numbers<[1], [0], [0], [1], [0, 0, 1, 1], [], []>} : vector<16x6xf32>, vector<6x128xf32>, vector<16x128xf32> -> vector<16x128xf32>
    %19 = arith.addf %16, %18 : vector<16x128xf32>
    %c0_20 = arith.constant 0 : index
    %c0_21 = arith.constant 0 : index
    %20 = vector.load %arg12[%c0_20, %c0_21] : memref<1x128xf32, #tpu.memory_space<vmem>>, vector<1x128xf32>
    %21 = vector.broadcast %20 : vector<1x128xf32> to vector<16x128xf32>
    %22 = arith.addf %19, %21 : vector<16x128xf32>
    %cst_22 = arith.constant 0.000000e+00 : f32
    %23 = vector.broadcast %cst_22 : f32 to vector<16x128xf32>
    %24 = arith.maximumf %22, %23 : vector<16x128xf32>
    %c0_23 = arith.constant 0 : index
    %c0_24 = arith.constant 0 : index
    %25 = vector.load %arg13[%c0_23, %c0_24] : memref<128x32xf32, #tpu.memory_space<vmem>>, vector<128x32xf32>
    %cst_25 = arith.constant dense<0.000000e+00> : vector<16x32xf32>
    %26 = tpu.matmul %24, %25, %cst_25 {dimension_numbers = #tpu.dot_dimension_numbers<[1], [0], [0], [1], [0, 0, 1, 1], [], []>} : vector<16x128xf32>, vector<128x32xf32>, vector<16x32xf32> -> vector<16x32xf32>
    %c0_26 = arith.constant 0 : index
    %c0_27 = arith.constant 0 : index
    %27 = vector.load %arg14[%c0_26, %c0_27] : memref<6x32xf32, #tpu.memory_space<vmem>>, vector<6x32xf32>
    %cst_28 = arith.constant dense<0.000000e+00> : vector<16x32xf32>
    %28 = tpu.matmul %3, %27, %cst_28 {dimension_numbers = #tpu.dot_dimension_numbers<[1], [0], [0], [1], [0, 0, 1, 1], [], []>} : vector<16x6xf32>, vector<6x32xf32>, vector<16x32xf32> -> vector<16x32xf32>
    %29 = arith.addf %26, %28 : vector<16x32xf32>
    %c0_29 = arith.constant 0 : index
    %c0_30 = arith.constant 0 : index
    %30 = vector.load %arg15[%c0_29, %c0_30] : memref<1x32xf32, #tpu.memory_space<vmem>>, vector<1x32xf32>
    %31 = vector.broadcast %30 : vector<1x32xf32> to vector<16x32xf32>
    %32 = arith.addf %29, %31 : vector<16x32xf32>
    %33 = math.tanh %32 : vector<16x32xf32>
    %c0_31 = arith.constant 0 : index
    %c0_32 = arith.constant 0 : index
    %c0_33 = arith.constant 0 : index
    %34 = vector.load %arg4[%c0_31, %c0_32, %c0_33] : memref<1x2x16xf32, #tpu.memory_space<vmem>>, vector<1x2x16xf32>
    %35 = vector.shape_cast %34 : vector<1x2x16xf32> to vector<2x16xf32>
    %cst_34 = arith.constant dense<0.000000e+00> : vector<2x32xf32>
    %36 = tpu.matmul %35, %33, %cst_34 {dimension_numbers = #tpu.dot_dimension_numbers<[1], [0], [0], [1], [0, 0, 1, 1], [], []>} : vector<2x16xf32>, vector<16x32xf32>, vector<2x32xf32> -> vector<2x32xf32>
    %c0_35 = arith.constant 0 : index
    %c0_36 = arith.constant 0 : index
    %c0_37 = arith.constant 0 : index
    %37 = vector.load %arg22[%c0_35, %c0_36, %c0_37] : memref<1x2x32xf32, #tpu.memory_space<vmem>>, vector<1x2x32xf32>
    %38 = vector.shape_cast %37 : vector<1x2x32xf32> to vector<2x32xf32>
    %39 = vector.shape_cast %36 : vector<2x32xf32> to vector<1x2x32xf32>
    tpu.vector_store %arg22[%c0_35, %c0_36, %c0_37], %39 {strides = array<i32>} : memref<1x2x32xf32, #tpu.memory_space<vmem>>, vector<1x2x32xf32>,
    %c0_38 = arith.constant 0 : index
    %c0_39 = arith.constant 0 : index
    %c0_40 = arith.constant 0 : index
    %40 = vector.load %arg5[%c0_38, %c0_39, %c0_40] : memref<1x16x16xf32, #tpu.memory_space<vmem>>, vector<1x16x16xf32>
    %41 = vector.shape_cast %40 : vector<1x16x16xf32> to vector<16x16xf32>
    %c0_41 = arith.constant 0 : index
    %c0_42 = arith.constant 0 : index
    %c0_43 = arith.constant 0 : index
    %42 = vector.load %arg6[%c0_41, %c0_42, %c0_43] : memref<1x16x480xf32, #tpu.memory_space<vmem>>, vector<1x16x480xf32>
    %43 = vector.shape_cast %42 : vector<1x16x480xf32> to vector<16x480xf32>
    %c0_44 = arith.constant 0 : index
    %c0_45 = arith.constant 0 : index
    %44 = vector.load %arg16[%c0_44, %c0_45] : memref<480x200xf32, #tpu.memory_space<vmem>>, vector<480x200xf32>
    %cst_46 = arith.constant dense<0.000000e+00> : vector<16x200xf32>
    %45 = tpu.matmul %43, %44, %cst_46 {dimension_numbers = #tpu.dot_dimension_numbers<[1], [0], [0], [1], [0, 0, 1, 1], [], []>} : vector<16x480xf32>, vector<480x200xf32>, vector<16x200xf32> -> vector<16x200xf32>
    %c0_47 = arith.constant 0 : index
    %c0_48 = arith.constant 0 : index
    %46 = vector.load %arg17[%c0_47, %c0_48] : memref<1x200xf32, #tpu.memory_space<vmem>>, vector<1x200xf32>
    %47 = vector.broadcast %46 : vector<1x200xf32> to vector<16x200xf32>
    %48 = arith.addf %45, %47 : vector<16x200xf32>
    %cst_49 = arith.constant 0.000000e+00 : f32
    %49 = vector.broadcast %cst_49 : f32 to vector<16x200xf32>
    %50 = arith.maximumf %48, %49 : vector<16x200xf32>
    %cst_50 = arith.constant dense<0.000000e+00> : vector<16x200xf32>
    %51 = tpu.matmul %41, %50, %cst_50 {dimension_numbers = #tpu.dot_dimension_numbers<[1], [0], [0], [1], [0, 0, 1, 1], [], []>} : vector<16x16xf32>, vector<16x200xf32>, vector<16x200xf32> -> vector<16x200xf32>
    %52 = arith.addf %51, %50 : vector<16x200xf32>
    %c0_51 = arith.constant 0 : index
    %c0_52 = arith.constant 0 : index
    %53 = vector.load %arg18[%c0_51, %c0_52] : memref<200x100xf32, #tpu.memory_space<vmem>>, vector<200x100xf32>
    %cst_53 = arith.constant dense<0.000000e+00> : vector<16x100xf32>
    %54 = tpu.matmul %52, %53, %cst_53 {dimension_numbers = #tpu.dot_dimension_numbers<[1], [0], [0], [1], [0, 0, 1, 1], [], []>} : vector<16x200xf32>, vector<200x100xf32>, vector<16x100xf32> -> vector<16x100xf32>
    %c0_54 = arith.constant 0 : index
    %c0_55 = arith.constant 0 : index
    %55 = vector.load %arg19[%c0_54, %c0_55] : memref<1x100xf32, #tpu.memory_space<vmem>>, vector<1x100xf32>
    %56 = vector.broadcast %55 : vector<1x100xf32> to vector<16x100xf32>
    %57 = arith.addf %54, %56 : vector<16x100xf32>
    %cst_56 = arith.constant 0.000000e+00 : f32
    %58 = vector.broadcast %cst_56 : f32 to vector<16x100xf32>
    %59 = arith.maximumf %57, %58 : vector<16x100xf32>
    %c0_57 = arith.constant 0 : index
    %c0_58 = arith.constant 0 : index
    %60 = vector.load %arg20[%c0_57, %c0_58] : memref<100x32xf32, #tpu.memory_space<vmem>>, vector<100x32xf32>
    %cst_59 = arith.constant dense<0.000000e+00> : vector<16x32xf32>
    %61 = tpu.matmul %59, %60, %cst_59 {dimension_numbers = #tpu.dot_dimension_numbers<[1], [0], [0], [1], [0, 0, 1, 1], [], []>} : vector<16x100xf32>, vector<100x32xf32>, vector<16x32xf32> -> vector<16x32xf32>
    %c0_60 = arith.constant 0 : index
    %c0_61 = arith.constant 0 : index
    %62 = vector.load %arg21[%c0_60, %c0_61] : memref<1x32xf32, #tpu.memory_space<vmem>>, vector<1x32xf32>
    %63 = vector.broadcast %62 : vector<1x32xf32> to vector<16x32xf32>
    %64 = arith.addf %61, %63 : vector<16x32xf32>
    %65 = math.tanh %64 : vector<16x32xf32>
    %c0_62 = arith.constant 0 : index
    %c0_63 = arith.constant 0 : index
    %c0_64 = arith.constant 0 : index
    %66 = vector.load %arg7[%c0_62, %c0_63, %c0_64] : memref<1x2x16xf32, #tpu.memory_space<vmem>>, vector<1x2x16xf32>
    %67 = vector.shape_cast %66 : vector<1x2x16xf32> to vector<2x16xf32>
    %cst_65 = arith.constant dense<0.000000e+00> : vector<2x32xf32>
    %68 = tpu.matmul %67, %65, %cst_65 {dimension_numbers = #tpu.dot_dimension_numbers<[1], [0], [0], [1], [0, 0, 1, 1], [], []>} : vector<2x16xf32>, vector<16x32xf32>, vector<2x32xf32> -> vector<2x32xf32>
    %c0_66 = arith.constant 0 : index
    %c0_67 = arith.constant 0 : index
    %c0_68 = arith.constant 0 : index
    %69 = vector.load %arg23[%c0_66, %c0_67, %c0_68] : memref<1x2x32xf32, #tpu.memory_space<vmem>>, vector<1x2x32xf32>
    %70 = vector.shape_cast %69 : vector<1x2x32xf32> to vector<2x32xf32>
    %71 = vector.shape_cast %68 : vector<2x32xf32> to vector<1x2x32xf32>
    tpu.vector_store %arg23[%c0_66, %c0_67, %c0_68], %71 {strides = array<i32>} : memref<1x2x32xf32, #tpu.memory_space<vmem>>, vector<1x2x32xf32>,
    return
  }
  func.func @transform_0(%arg0: i32) -> (i32, i32, i32) {
    %c0_i32 = arith.constant 0 : i32
    %c0_i32_0 = arith.constant 0 : i32
    %c0_i32_1 = arith.constant 0 : i32
    return %arg0, %c0_i32, %c0_i32_0 : i32, i32, i32
  }
  func.func @transform_1(%arg0: i32) -> (i32, i32, i32) {
    %c0_i32 = arith.constant 0 : i32
    %c0_i32_0 = arith.constant 0 : i32
    %c0_i32_1 = arith.constant 0 : i32
    return %arg0, %c0_i32, %c0_i32_0 : i32, i32, i32
  }
  func.func @transform_2(%arg0: i32) -> (i32, i32, i32) {
    %c0_i32 = arith.constant 0 : i32
    %c0_i32_0 = arith.constant 0 : i32
    %c0_i32_1 = arith.constant 0 : i32
    return %arg0, %c0_i32, %c0_i32_0 : i32, i32, i32
  }
  func.func @transform_3(%arg0: i32) -> (i32, i32, i32) {
    %c0_i32 = arith.constant 0 : i32
    %c0_i32_0 = arith.constant 0 : i32
    %c0_i32_1 = arith.constant 0 : i32
    return %arg0, %c0_i32, %c0_i32_0 : i32, i32, i32
  }
  func.func @transform_4(%arg0: i32) -> (i32, i32, i32) {
    %c0_i32 = arith.constant 0 : i32
    %c0_i32_0 = arith.constant 0 : i32
    %c0_i32_1 = arith.constant 0 : i32
    return %arg0, %c0_i32, %c0_i32_0 : i32, i32, i32
  }
  func.func @transform_5(%arg0: i32) -> (i32, i32, i32) {
    %c0_i32 = arith.constant 0 : i32
    %c0_i32_0 = arith.constant 0 : i32
    %c0_i32_1 = arith.constant 0 : i32
    return %arg0, %c0_i32, %c0_i32_0 : i32, i32, i32
  }
  func.func @transform_6(%arg0: i32) -> (i32, i32, i32) {
    %c0_i32 = arith.constant 0 : i32
    %c0_i32_0 = arith.constant 0 : i32
    %c0_i32_1 = arith.constant 0 : i32
    return %arg0, %c0_i32, %c0_i32_0 : i32, i32, i32
  }
  func.func @transform_7(%arg0: i32) -> (i32, i32) {
    %c0_i32 = arith.constant 0 : i32
    %c0_i32_0 = arith.constant 0 : i32
    %c0_i32_1 = arith.constant 0 : i32
    return %c0_i32, %c0_i32_0 : i32, i32
  }
  func.func @transform_8(%arg0: i32) -> (i32, i32) {
    %c0_i32 = arith.constant 0 : i32
    %c0_i32_0 = arith.constant 0 : i32
    %c0_i32_1 = arith.constant 0 : i32
    return %c0_i32, %c0_i32_0 : i32, i32
  }
  func.func @transform_9(%arg0: i32) -> (i32, i32) {
    %c0_i32 = arith.constant 0 : i32
    %c0_i32_0 = arith.constant 0 : i32
    %c0_i32_1 = arith.constant 0 : i32
    return %c0_i32, %c0_i32_0 : i32, i32
  }
  func.func @transform_10(%arg0: i32) -> (i32, i32) {
    %c0_i32 = arith.constant 0 : i32
    %c0_i32_0 = arith.constant 0 : i32
    %c0_i32_1 = arith.constant 0 : i32
    return %c0_i32, %c0_i32_0 : i32, i32
  }
  func.func @transform_11(%arg0: i32) -> (i32, i32) {
    %c0_i32 = arith.constant 0 : i32
    %c0_i32_0 = arith.constant 0 : i32
    %c0_i32_1 = arith.constant 0 : i32
    return %c0_i32, %c0_i32_0 : i32, i32
  }
  func.func @transform_12(%arg0: i32) -> (i32, i32) {
    %c0_i32 = arith.constant 0 : i32
    %c0_i32_0 = arith.constant 0 : i32
    %c0_i32_1 = arith.constant 0 : i32
    return %c0_i32, %c0_i32_0 : i32, i32
  }
  func.func @transform_13(%arg0: i32) -> (i32, i32) {
    %c0_i32 = arith.constant 0 : i32
    %c0_i32_0 = arith.constant 0 : i32
    %c0_i32_1 = arith.constant 0 : i32
    return %c0_i32, %c0_i32_0 : i32, i32
  }
  func.func @transform_14(%arg0: i32) -> (i32, i32) {
    %c0_i32 = arith.constant 0 : i32
    %c0_i32_0 = arith.constant 0 : i32
    %c0_i32_1 = arith.constant 0 : i32
    return %c0_i32, %c0_i32_0 : i32, i32
  }
  func.func @transform_15(%arg0: i32) -> (i32, i32) {
    %c0_i32 = arith.constant 0 : i32
    %c0_i32_0 = arith.constant 0 : i32
    %c0_i32_1 = arith.constant 0 : i32
    return %c0_i32, %c0_i32_0 : i32, i32
  }
  func.func @transform_16(%arg0: i32) -> (i32, i32) {
    %c0_i32 = arith.constant 0 : i32
    %c0_i32_0 = arith.constant 0 : i32
    %c0_i32_1 = arith.constant 0 : i32
    return %c0_i32, %c0_i32_0 : i32, i32
  }
  func.func @transform_17(%arg0: i32) -> (i32, i32) {
    %c0_i32 = arith.constant 0 : i32
    %c0_i32_0 = arith.constant 0 : i32
    %c0_i32_1 = arith.constant 0 : i32
    return %c0_i32, %c0_i32_0 : i32, i32
  }
  func.func @transform_18(%arg0: i32) -> (i32, i32) {
    %c0_i32 = arith.constant 0 : i32
    %c0_i32_0 = arith.constant 0 : i32
    %c0_i32_1 = arith.constant 0 : i32
    return %c0_i32, %c0_i32_0 : i32, i32
  }
  func.func @transform_19(%arg0: i32) -> (i32, i32) {
    %c0_i32 = arith.constant 0 : i32
    %c0_i32_0 = arith.constant 0 : i32
    %c0_i32_1 = arith.constant 0 : i32
    return %c0_i32, %c0_i32_0 : i32, i32
  }
  func.func @transform_20(%arg0: i32) -> (i32, i32) {
    %c0_i32 = arith.constant 0 : i32
    %c0_i32_0 = arith.constant 0 : i32
    %c0_i32_1 = arith.constant 0 : i32
    return %c0_i32, %c0_i32_0 : i32, i32
  }
  func.func @transform_21(%arg0: i32) -> (i32, i32, i32) {
    %c0_i32 = arith.constant 0 : i32
    %c0_i32_0 = arith.constant 0 : i32
    %c0_i32_1 = arith.constant 0 : i32
    return %arg0, %c0_i32, %c0_i32_0 : i32, i32, i32
  }
  func.func @transform_22(%arg0: i32) -> (i32, i32, i32) {
    %c0_i32 = arith.constant 0 : i32
    %c0_i32_0 = arith.constant 0 : i32
    %c0_i32_1 = arith.constant 0 : i32
    return %arg0, %c0_i32, %c0_i32_0 : i32, i32, i32
  }
}

</mosaic_0001>

<llo_original>
// kernel: gcn_forward.1
$region0: #{gcn_forward.1}
  #allocation0 [shape = 'u32[]', space=smem, size = 0x4, offset = 0x4, fixed_abs, tag = 'smem constant byte address 0x4 - core index']
  #allocation1 [shape = 'u32[72,128]{1,0:T(1,128)}', space=vmem, size = 0x9000, scoped, tag = 'internal scratch']
  %s0 = inlined_call_operand.vmem [shape: f32[2,16,16], index: 0, kind: input, shape index: {}]
  %s1 = inlined_call_operand.vmem [shape: f32[2,16,43], index: 1, kind: input, shape index: {}]
  %s2 = inlined_call_operand.vmem [shape: f32[2,16,6], index: 2, kind: input, shape index: {}]
  %s3 = inlined_call_operand.vmem [shape: f32[2,2,16], index: 3, kind: input, shape index: {}]
  %s4 = inlined_call_operand.vmem [shape: f32[2,16,16], index: 4, kind: input, shape index: {}]
  %s5 = inlined_call_operand.vmem [shape: f32[2,16,480], index: 5, kind: input, shape index: {}]
  %s6 = inlined_call_operand.vmem [shape: f32[2,2,16], index: 6, kind: input, shape index: {}]
  %s7 = inlined_call_operand.vmem [shape: f32[43,128], index: 7, kind: input, shape index: {}]
  %s8 = inlined_call_operand.vmem [shape: f32[1,128], index: 8, kind: input, shape index: {}]
  %s9 = inlined_call_operand.vmem [shape: f32[128,128], index: 9, kind: input, shape index: {}]
  %s10 = inlined_call_operand.vmem [shape: f32[6,128], index: 10, kind: input, shape index: {}]
  %s11 = inlined_call_operand.vmem [shape: f32[1,128], index: 11, kind: input, shape index: {}]
  %s12 = inlined_call_operand.vmem [shape: f32[128,32], index: 12, kind: input, shape index: {}]
  %s13 = inlined_call_operand.vmem [shape: f32[6,32], index: 13, kind: input, shape index: {}]
  %s14 = inlined_call_operand.vmem [shape: f32[1,32], index: 14, kind: input, shape index: {}]
  %s15 = inlined_call_operand.vmem [shape: f32[480,200], index: 15, kind: input, shape index: {}]
  %s16 = inlined_call_operand.vmem [shape: f32[1,200], index: 16, kind: input, shape index: {}]
  %s17 = inlined_call_operand.vmem [shape: f32[200,100], index: 17, kind: input, shape index: {}]
  %s18 = inlined_call_operand.vmem [shape: f32[1,100], index: 18, kind: input, shape index: {}]
  %s19 = inlined_call_operand.vmem [shape: f32[100,32], index: 19, kind: input, shape index: {}]
  %s20 = inlined_call_operand.vmem [shape: f32[1,32], index: 20, kind: input, shape index: {}]
  %s21 = inlined_call_operand.vmem [shape: f32[2,2,32], index: 21, kind: output, shape index: {0}]
  %s22 = inlined_call_operand.vmem [shape: f32[2,2,32], index: 22, kind: output, shape index: {1}]
  %23 = xla_tuple %s21, %s22
  %s24 = sld [smem:[#allocation0]]
  $region125: #{gcn_forward.1} parent=0
    _
  %s26 = ssub.s32 1, %s24
  %s27 = scalar_select 0, %s26, %s24
  loop: start=0, step=1, limit=4
  $region2: #{gcn_forward.1} parent=0 // loop_pre_header
    _
  $region3: #{gcn_forward.1} parent=0 // loop_header
    %s29 = sphi 0, %s33
    %p30 = scmp.ge.s32.totalorder %s29, 4
    %s39 = sphi 0, %s41
    %s42 = sphi 0, %s39
    %s43 = sphi 0, %s42
    %s59 = sphi 0, %s43
    %s65 = sphi 0, %s67
    %s68 = sphi 0, %s65
    %s69 = sphi 0, %s68
    %s85 = sphi 0, %s69
    %s91 = sphi 0, %s93
    %s94 = sphi 0, %s91
    %s95 = sphi 0, %s94
    %s111 = sphi 0, %s95
    %s117 = sphi 0, %s119
    %s120 = sphi 0, %s117
    %s121 = sphi 0, %s120
    %s137 = sphi 0, %s121
    %s143 = sphi 0, %s145
    %s146 = sphi 0, %s143
    %s147 = sphi 0, %s146
    %s163 = sphi 0, %s147
    %s169 = sphi 0, %s171
    %s172 = sphi 0, %s169
    %s173 = sphi 0, %s172
    %s189 = sphi 0, %s173
    %s195 = sphi 0, %s197
    %s198 = sphi 0, %s195
    %s199 = sphi 0, %s198
    %s215 = sphi 0, %s199
    %s219 = sphi 0, %s219
    %s221 = sphi 0, %s219
    %s222 = sphi 0, %s221
    %s236 = sphi 0, %s222
    %s240 = sphi 0, %s240
    %s242 = sphi 0, %s240
    %s243 = sphi 0, %s242
    %s257 = sphi 0, %s243
    %s261 = sphi 0, %s261
    %s263 = sphi 0, %s261
    %s264 = sphi 0, %s263
    %s278 = sphi 0, %s264
    %s282 = sphi 0, %s282
    %s284 = sphi 0, %s282
    %s285 = sphi 0, %s284
    %s299 = sphi 0, %s285
    %s303 = sphi 0, %s303
    %s305 = sphi 0, %s303
    %s306 = sphi 0, %s305
    %s320 = sphi 0, %s306
    %s324 = sphi 0, %s324
    %s326 = sphi 0, %s324
    %s327 = sphi 0, %s326
    %s341 = sphi 0, %s327
    %s345 = sphi 0, %s345
    %s347 = sphi 0, %s345
    %s348 = sphi 0, %s347
    %s362 = sphi 0, %s348
    %s366 = sphi 0, %s366
    %s368 = sphi 0, %s366
    %s369 = sphi 0, %s368
    %s383 = sphi 0, %s369
    %s387 = sphi 0, %s387
    %s389 = sphi 0, %s387
    %s390 = sphi 0, %s389
    %s404 = sphi 0, %s390
    %s408 = sphi 0, %s408
    %s410 = sphi 0, %s408
    %s411 = sphi 0, %s410
    %s425 = sphi 0, %s411
    %s429 = sphi 0, %s429
    %s431 = sphi 0, %s429
    %s432 = sphi 0, %s431
    %s446 = sphi 0, %s432
    %s450 = sphi 0, %s450
    %s452 = sphi 0, %s450
    %s453 = sphi 0, %s452
    %s467 = sphi 0, %s453
    %s471 = sphi 0, %s471
    %s473 = sphi 0, %s471
    %s474 = sphi 0, %s473
    %s488 = sphi 0, %s474
    %s492 = sphi 0, %s492
    %s494 = sphi 0, %s492
    %s495 = sphi 0, %s494
    %s509 = sphi 0, %s495
    %s515 = sphi 0, %s517
    %s518 = sphi 0, %s515
    %s519 = sphi 0, %s518
    %s535 = sphi 0, %s519
    %s541 = sphi 0, %s543
    %s544 = sphi 0, %s541
    %s545 = sphi 0, %s544
    %s561 = sphi 0, %s545
  $region4: #{gcn_forward.1} parent=0 // loop_header_branch
    %32 = sbr.rel (%p30) target = $region8
  $region5: #{gcn_forward.1} parent=0 // loop_body
    %s34 = ssub.s32 %s29, 1
    %s35 = ssub.s32 %s29, 2
    %s36 = sadd.s32 %s29, 1
    %s37 = ssub.s32 %s29, %s36
    %p38 = scmp.eq.s32.totalorder %s37, 0
    %s40 = sadd.s32 %s39, 1
    %s41 = scalar_select %p38, %s39, %s40
    %p44 = pneg %p38
    %p45 = scmp.eq.s32.totalorder %s29, 1
    %p46 = por %p44, %p45
    %p47 = scmp.ne.s32.totalorder %s39, %s42
    %p48 = scmp.eq.s32.totalorder %s29, 0
    %p49 = por %p47, %p48
    %p50 = scmp.ne.s32.totalorder %s39, %s42
    %p51 = scmp.eq.s32.totalorder %s34, 1
    %p52 = por %p50, %p51
    %p53 = scmp.ne.s32.totalorder %s42, %s43
    %p54 = scmp.eq.s32.totalorder %s34, 0
    %p55 = por %p53, %p54
    %p56 = scmp.ne.s32.totalorder %s42, %s43
    %p57 = scmp.eq.s32.totalorder %s35, 1
    %p58 = por %p56, %p57
    %p60 = scmp.ne.s32.totalorder %s43, %s59
    %p61 = scmp.eq.s32.totalorder %s35, 0
    %p62 = por %p60, %p61
    %s63 = ssub.s32 %s29, %s36
    %p64 = scmp.eq.s32.totalorder %s63, 0
    %s66 = sadd.s32 %s65, 1
    %s67 = scalar_select %p64, %s65, %s66
    %p70 = pneg %p64
    %p71 = scmp.eq.s32.totalorder %s29, 1
    %p72 = por %p70, %p71
    %p73 = scmp.ne.s32.totalorder %s65, %s68
    %p74 = scmp.eq.s32.totalorder %s29, 0
    %p75 = por %p73, %p74
    %p76 = scmp.ne.s32.totalorder %s65, %s68
    %p77 = scmp.eq.s32.totalorder %s34, 1
    %p78 = por %p76, %p77
    %p79 = scmp.ne.s32.totalorder %s68, %s69
    %p80 = scmp.eq.s32.totalorder %s34, 0
    %p81 = por %p79, %p80
    %p82 = scmp.ne.s32.totalorder %s68, %s69
    %p83 = scmp.eq.s32.totalorder %s35, 1
    %p84 = por %p82, %p83
    %p86 = scmp.ne.s32.totalorder %s69, %s85
    %p87 = scmp.eq.s32.totalorder %s35, 0
    %p88 = por %p86, %p87
    %s89 = ssub.s32 %s29, %s36
    %p90 = scmp.eq.s32.totalorder %s89, 0
    %s92 = sadd.s32 %s91, 1
    %s93 = scalar_select %p90, %s91, %s92
    %p96 = pneg %p90
    %p97 = scmp.eq.s32.totalorder %s29, 1
    %p98 = por %p96, %p97
    %p99 = scmp.ne.s32.totalorder %s91, %s94
    %p100 = scmp.eq.s32.totalorder %s29, 0
    %p101 = por %p99, %p100
    %p102 = scmp.ne.s32.totalorder %s91, %s94
    %p103 = scmp.eq.s32.totalorder %s34, 1
    %p104 = por %p102, %p103
    %p105 = scmp.ne.s32.totalorder %s94, %s95
    %p106 = scmp.eq.s32.totalorder %s34, 0
    %p107 = por %p105, %p106
    %p108 = scmp.ne.s32.totalorder %s94, %s95
    %p109 = scmp.eq.s32.totalorder %s35, 1
    %p110 = por %p108, %p109
    %p112 = scmp.ne.s32.totalorder %s95, %s111
    %p113 = scmp.eq.s32.totalorder %s35, 0
    %p114 = por %p112, %p113
    %s115 = ssub.s32 %s29, %s36
    %p116 = scmp.eq.s32.totalorder %s115, 0
    %s118 = sadd.s32 %s117, 1
    %s119 = scalar_select %p116, %s117, %s118
    %p122 = pneg %p116
    %p123 = scmp.eq.s32.totalorder %s29, 1
    %p124 = por %p122, %p123
    %p125 = scmp.ne.s32.totalorder %s117, %s120
    %p126 = scmp.eq.s32.totalorder %s29, 0
    %p127 = por %p125, %p126
    %p128 = scmp.ne.s32.totalorder %s117, %s120
    %p129 = scmp.eq.s32.totalorder %s34, 1
    %p130 = por %p128, %p129
    %p131 = scmp.ne.s32.totalorder %s120, %s121
    %p132 = scmp.eq.s32.totalorder %s34, 0
    %p133 = por %p131, %p132
    %p134 = scmp.ne.s32.totalorder %s120, %s121
    %p135 = scmp.eq.s32.totalorder %s35, 1
    %p136 = por %p134, %p135
    %p138 = scmp.ne.s32.totalorder %s121, %s137
    %p139 = scmp.eq.s32.totalorder %s35, 0
    %p140 = por %p138, %p139
    %s141 = ssub.s32 %s29, %s36
    %p142 = scmp.eq.s32.totalorder %s141, 0
    %s144 = sadd.s32 %s143, 1
    %s145 = scalar_select %p142, %s143, %s144
    %p148 = pneg %p142
    %p149 = scmp.eq.s32.totalorder %s29, 1
    %p150 = por %p148, %p149
    %p151 = scmp.ne.s32.totalorder %s143, %s146
    %p152 = scmp.eq.s32.totalorder %s29, 0
    %p153 = por %p151, %p152
    %p154 = scmp.ne.s32.totalorder %s143, %s146
    %p155 = scmp.eq.s32.totalorder %s34, 1
    %p156 = por %p154, %p155
    %p157 = scmp.ne.s32.totalorder %s146, %s147
    %p158 = scmp.eq.s32.totalorder %s34, 0
    %p159 = por %p157, %p158
    %p160 = scmp.ne.s32.totalorder %s146, %s147
    %p161 = scmp.eq.s32.totalorder %s35, 1
    %p162 = por %p160, %p161
    %p164 = scmp.ne.s32.totalorder %s147, %s163
    %p165 = scmp.eq.s32.totalorder %s35, 0
    %p166 = por %p164, %p165
    %s167 = ssub.s32 %s29, %s36
    %p168 = scmp.eq.s32.totalorder %s167, 0
    %s170 = sadd.s32 %s169, 1
    %s171 = scalar_select %p168, %s169, %s170
    %p174 = pneg %p168
    %p175 = scmp.eq.s32.totalorder %s29, 1
    %p176 = por %p174, %p175
    %p177 = scmp.ne.s32.totalorder %s169, %s172
    %p178 = scmp.eq.s32.totalorder %s29, 0
    %p179 = por %p177, %p178
    %p180 = scmp.ne.s32.totalorder %s169, %s172
    %p181 = scmp.eq.s32.totalorder %s34, 1
    %p182 = por %p180, %p181
    %p183 = scmp.ne.s32.totalorder %s172, %s173
    %p184 = scmp.eq.s32.totalorder %s34, 0
    %p185 = por %p183, %p184
    %p186 = scmp.ne.s32.totalorder %s172, %s173
    %p187 = scmp.eq.s32.totalorder %s35, 1
    %p188 = por %p186, %p187
    %p190 = scmp.ne.s32.totalorder %s173, %s189
    %p191 = scmp.eq.s32.totalorder %s35, 0
    %p192 = por %p190, %p191
    %s193 = ssub.s32 %s29, %s36
    %p194 = scmp.eq.s32.totalorder %s193, 0
    %s196 = sadd.s32 %s195, 1
    %s197 = scalar_select %p194, %s195, %s196
    %p200 = pneg %p194
    %p201 = scmp.eq.s32.totalorder %s29, 1
    %p202 = por %p200, %p201
    %p203 = scmp.ne.s32.totalorder %s195, %s198
    %p204 = scmp.eq.s32.totalorder %s29, 0
    %p205 = por %p203, %p204
    %p206 = scmp.ne.s32.totalorder %s195, %s198
    %p207 = scmp.eq.s32.totalorder %s34, 1
    %p208 = por %p206, %p207
    %p209 = scmp.ne.s32.totalorder %s198, %s199
    %p210 = scmp.eq.s32.totalorder %s34, 0
    %p211 = por %p209, %p210
    %p212 = scmp.ne.s32.totalorder %s198, %s199
    %p213 = scmp.eq.s32.totalorder %s35, 1
    %p214 = por %p212, %p213
    %p216 = scmp.ne.s32.totalorder %s199, %s215
    %p217 = scmp.eq.s32.totalorder %s35, 0
    %p218 = por %p216, %p217
    %s220 = sadd.s32 %s219, 1
    %p223 = scmp.eq.s32.totalorder %s29, 1
    %p224 = scmp.ne.s32.totalorder %s219, %s221
    %p225 = scmp.eq.s32.totalorder %s29, 0
    %p226 = por %p224, %p225
    %p227 = scmp.ne.s32.totalorder %s219, %s221
    %p228 = scmp.eq.s32.totalorder %s34, 1
    %p229 = por %p227, %p228
    %p230 = scmp.ne.s32.totalorder %s221, %s222
    %p231 = scmp.eq.s32.totalorder %s34, 0
    %p232 = por %p230, %p231
    %p233 = scmp.ne.s32.totalorder %s221, %s222
    %p234 = scmp.eq.s32.totalorder %s35, 1
    %p235 = por %p233, %p234
    %p237 = scmp.ne.s32.totalorder %s222, %s236
    %p238 = scmp.eq.s32.totalorder %s35, 0
    %p239 = por %p237, %p238
    %s241 = sadd.s32 %s240, 1
    %p244 = scmp.eq.s32.totalorder %s29, 1
    %p245 = scmp.ne.s32.totalorder %s240, %s242
    %p246 = scmp.eq.s32.totalorder %s29, 0
    %p247 = por %p245, %p246
    %p248 = scmp.ne.s32.totalorder %s240, %s242
    %p249 = scmp.eq.s32.totalorder %s34, 1
    %p250 = por %p248, %p249
    %p251 = scmp.ne.s32.totalorder %s242, %s243
    %p252 = scmp.eq.s32.totalorder %s34, 0
    %p253 = por %p251, %p252
    %p254 = scmp.ne.s32.totalorder %s242, %s243
    %p255 = scmp.eq.s32.totalorder %s35, 1
    %p256 = por %p254, %p255
    %p258 = scmp.ne.s32.totalorder %s243, %s257
    %p259 = scmp.eq.s32.totalorder %s35, 0
    %p260 = por %p258, %p259
    %s262 = sadd.s32 %s261, 1
    %p265 = scmp.eq.s32.totalorder %s29, 1
    %p266 = scmp.ne.s32.totalorder %s261, %s263
    %p267 = scmp.eq.s32.totalorder %s29, 0
    %p268 = por %p266, %p267
    %p269 = scmp.ne.s32.totalorder %s261, %s263
    %p270 = scmp.eq.s32.totalorder %s34, 1
    %p271 = por %p269, %p270
    %p272 = scmp.ne.s32.totalorder %s263, %s264
    %p273 = scmp.eq.s32.totalorder %s34, 0
    %p274 = por %p272, %p273
    %p275 = scmp.ne.s32.totalorder %s263, %s264
    %p276 = scmp.eq.s32.totalorder %s35, 1
    %p277 = por %p275, %p276
    %p279 = scmp.ne.s32.totalorder %s264, %s278
    %p280 = scmp.eq.s32.totalorder %s35, 0
    %p281 = por %p279, %p280
    %s283 = sadd.s32 %s282, 1
    %p286 = scmp.eq.s32.totalorder %s29, 1
    %p287 = scmp.ne.s32.totalorder %s282, %s284
    %p288 = scmp.eq.s32.totalorder %s29, 0
    %p289 = por %p287, %p288
    %p290 = scmp.ne.s32.totalorder %s282, %s284
    %p291 = scmp.eq.s32.totalorder %s34, 1
    %p292 = por %p290, %p291
    %p293 = scmp.ne.s32.totalorder %s284, %s285
    %p294 = scmp.eq.s32.totalorder %s34, 0
    %p295 = por %p293, %p294
    %p296 = scmp.ne.s32.totalorder %s284, %s285
    %p297 = scmp.eq.s32.totalorder %s35, 1
    %p298 = por %p296, %p297
    %p300 = scmp.ne.s32.totalorder %s285, %s299
    %p301 = scmp.eq.s32.totalorder %s35, 0
    %p302 = por %p300, %p301
    %s304 = sadd.s32 %s303, 1
    %p307 = scmp.eq.s32.totalorder %s29, 1
    %p308 = scmp.ne.s32.totalorder %s303, %s305
    %p309 = scmp.eq.s32.totalorder %s29, 0
    %p310 = por %p308, %p309
    %p311 = scmp.ne.s32.totalorder %s303, %s305
    %p312 = scmp.eq.s32.totalorder %s34, 1
    %p313 = por %p311, %p312
    %p314 = scmp.ne.s32.totalorder %s305, %s306
    %p315 = scmp.eq.s32.totalorder %s34, 0
    %p316 = por %p314, %p315
    %p317 = scmp.ne.s32.totalorder %s305, %s306
    %p318 = scmp.eq.s32.totalorder %s35, 1
    %p319 = por %p317, %p318
    %p321 = scmp.ne.s32.totalorder %s306, %s320
    %p322 = scmp.eq.s32.totalorder %s35, 0
    %p323 = por %p321, %p322
    %s325 = sadd.s32 %s324, 1
    %p328 = scmp.eq.s32.totalorder %s29, 1
    %p329 = scmp.ne.s32.totalorder %s324, %s326
    %p330 = scmp.eq.s32.totalorder %s29, 0
    %p331 = por %p329, %p330
    %p332 = scmp.ne.s32.totalorder %s324, %s326
    %p333 = scmp.eq.s32.totalorder %s34, 1
    %p334 = por %p332, %p333
    %p335 = scmp.ne.s32.totalorder %s326, %s327
    %p336 = scmp.eq.s32.totalorder %s34, 0
    %p337 = por %p335, %p336
    %p338 = scmp.ne.s32.totalorder %s326, %s327
    %p339 = scmp.eq.s32.totalorder %s35, 1
    %p340 = por %p338, %p339
    %p342 = scmp.ne.s32.totalorder %s327, %s341
    %p343 = scmp.eq.s32.totalorder %s35, 0
    %p344 = por %p342, %p343
    %s346 = sadd.s32 %s345, 1
    %p349 = scmp.eq.s32.totalorder %s29, 1
    %p350 = scmp.ne.s32.totalorder %s345, %s347
    %p351 = scmp.eq.s32.totalorder %s29, 0
    %p352 = por %p350, %p351
    %p353 = scmp.ne.s32.totalorder %s345, %s347
    %p354 = scmp.eq.s32.totalorder %s34, 1
    %p355 = por %p353, %p354
    %p356 = scmp.ne.s32.totalorder %s347, %s348
    %p357 = scmp.eq.s32.totalorder %s34, 0
    %p358 = por %p356, %p357
    %p359 = scmp.ne.s32.totalorder %s347, %s348
    %p360 = scmp.eq.s32.totalorder %s35, 1
    %p361 = por %p359, %p360
    %p363 = scmp.ne.s32.totalorder %s348, %s362
    %p364 = scmp.eq.s32.totalorder %s35, 0
    %p365 = por %p363, %p364
    %s367 = sadd.s32 %s366, 1
    %p370 = scmp.eq.s32.totalorder %s29, 1
    %p371 = scmp.ne.s32.totalorder %s366, %s368
    %p372 = scmp.eq.s32.totalorder %s29, 0
    %p373 = por %p371, %p372
    %p374 = scmp.ne.s32.totalorder %s366, %s368
    %p375 = scmp.eq.s32.totalorder %s34, 1
    %p376 = por %p374, %p375
    %p377 = scmp.ne.s32.totalorder %s368, %s369
    %p378 = scmp.eq.s32.totalorder %s34, 0
    %p379 = por %p377, %p378
    %p380 = scmp.ne.s32.totalorder %s368, %s369
    %p381 = scmp.eq.s32.totalorder %s35, 1
    %p382 = por %p380, %p381
    %p384 = scmp.ne.s32.totalorder %s369, %s383
    %p385 = scmp.eq.s32.totalorder %s35, 0
    %p386 = por %p384, %p385
    %s388 = sadd.s32 %s387, 1
    %p391 = scmp.eq.s32.totalorder %s29, 1
    %p392 = scmp.ne.s32.totalorder %s387, %s389
    %p393 = scmp.eq.s32.totalorder %s29, 0
    %p394 = por %p392, %p393
    %p395 = scmp.ne.s32.totalorder %s387, %s389
    %p396 = scmp.eq.s32.totalorder %s34, 1
    %p397 = por %p395, %p396
    %p398 = scmp.ne.s32.totalorder %s389, %s390
    %p399 = scmp.eq.s32.totalorder %s34, 0
    %p400 = por %p398, %p399
    %p401 = scmp.ne.s32.totalorder %s389, %s390
    %p402 = scmp.eq.s32.totalorder %s35, 1
    %p403 = por %p401, %p402
    %p405 = scmp.ne.s32.totalorder %s390, %s404
    %p406 = scmp.eq.s32.totalorder %s35, 0
    %p407 = por %p405, %p406
    %s409 = sadd.s32 %s408, 1
    %p412 = scmp.eq.s32.totalorder %s29, 1
    %p413 = scmp.ne.s32.totalorder %s408, %s410
    %p414 = scmp.eq.s32.totalorder %s29, 0
    %p415 = por %p413, %p414
    %p416 = scmp.ne.s32.totalorder %s408, %s410
    %p417 = scmp.eq.s32.totalorder %s34, 1
    %p418 = por %p416, %p417
    %p419 = scmp.ne.s32.totalorder %s410, %s411
    %p420 = scmp.eq.s32.totalorder %s34, 0
    %p421 = por %p419, %p420
    %p422 = scmp.ne.s32.totalorder %s410, %s411
    %p423 = scmp.eq.s32.totalorder %s35, 1
    %p424 = por %p422, %p423
    %p426 = scmp.ne.s32.totalorder %s411, %s425
    %p427 = scmp.eq.s32.totalorder %s35, 0
    %p428 = por %p426, %p427
    %s430 = sadd.s32 %s429, 1
    %p433 = scmp.eq.s32.totalorder %s29, 1
    %p434 = scmp.ne.s32.totalorder %s429, %s431
    %p435 = scmp.eq.s32.totalorder %s29, 0
    %p436 = por %p434, %p435
    %p437 = scmp.ne.s32.totalorder %s429, %s431
    %p438 = scmp.eq.s32.totalorder %s34, 1
    %p439 = por %p437, %p438
    %p440 = scmp.ne.s32.totalorder %s431, %s432
    %p441 = scmp.eq.s32.totalorder %s34, 0
    %p442 = por %p440, %p441
    %p443 = scmp.ne.s32.totalorder %s431, %s432
    %p444 = scmp.eq.s32.totalorder %s35, 1
    %p445 = por %p443, %p444
    %p447 = scmp.ne.s32.totalorder %s432, %s446
    %p448 = scmp.eq.s32.totalorder %s35, 0
    %p449 = por %p447, %p448
    %s451 = sadd.s32 %s450, 1
    %p454 = scmp.eq.s32.totalorder %s29, 1
    %p455 = scmp.ne.s32.totalorder %s450, %s452
    %p456 = scmp.eq.s32.totalorder %s29, 0
    %p457 = por %p455, %p456
    %p458 = scmp.ne.s32.totalorder %s450, %s452
    %p459 = scmp.eq.s32.totalorder %s34, 1
    %p460 = por %p458, %p459
    %p461 = scmp.ne.s32.totalorder %s452, %s453
    %p462 = scmp.eq.s32.totalorder %s34, 0
    %p463 = por %p461, %p462
    %p464 = scmp.ne.s32.totalorder %s452, %s453
    %p465 = scmp.eq.s32.totalorder %s35, 1
    %p466 = por %p464, %p465
    %p468 = scmp.ne.s32.totalorder %s453, %s467
    %p469 = scmp.eq.s32.totalorder %s35, 0
    %p470 = por %p468, %p469
    %s472 = sadd.s32 %s471, 1
    %p475 = scmp.eq.s32.totalorder %s29, 1
    %p476 = scmp.ne.s32.totalorder %s471, %s473
    %p477 = scmp.eq.s32.totalorder %s29, 0
    %p478 = por %p476, %p477
    %p479 = scmp.ne.s32.totalorder %s471, %s473
    %p480 = scmp.eq.s32.totalorder %s34, 1
    %p481 = por %p479, %p480
    %p482 = scmp.ne.s32.totalorder %s473, %s474
    %p483 = scmp.eq.s32.totalorder %s34, 0
    %p484 = por %p482, %p483
    %p485 = scmp.ne.s32.totalorder %s473, %s474
    %p486 = scmp.eq.s32.totalorder %s35, 1
    %p487 = por %p485, %p486
    %p489 = scmp.ne.s32.totalorder %s474, %s488
    %p490 = scmp.eq.s32.totalorder %s35, 0
    %p491 = por %p489, %p490
    %s493 = sadd.s32 %s492, 1
    %p496 = scmp.eq.s32.totalorder %s29, 1
    %p497 = scmp.ne.s32.totalorder %s492, %s494
    %p498 = scmp.eq.s32.totalorder %s29, 0
    %p499 = por %p497, %p498
    %p500 = scmp.ne.s32.totalorder %s492, %s494
    %p501 = scmp.eq.s32.totalorder %s34, 1
    %p502 = por %p500, %p501
    %p503 = scmp.ne.s32.totalorder %s494, %s495
    %p504 = scmp.eq.s32.totalorder %s34, 0
    %p505 = por %p503, %p504
    %p506 = scmp.ne.s32.totalorder %s494, %s495
    %p507 = scmp.eq.s32.totalorder %s35, 1
    %p508 = por %p506, %p507
    %p510 = scmp.ne.s32.totalorder %s495, %s509
    %p511 = scmp.eq.s32.totalorder %s35, 0
    %p512 = por %p510, %p511
    %s513 = ssub.s32 %s29, %s36
    %p514 = scmp.eq.s32.totalorder %s513, 0
    %s516 = sadd.s32 %s515, 1
    %s517 = scalar_select %p514, %s515, %s516
    %p520 = pneg %p514
    %p521 = scmp.eq.s32.totalorder %s29, 1
    %p522 = por %p520, %p521
    %p523 = scmp.ne.s32.totalorder %s515, %s518
    %p524 = scmp.eq.s32.totalorder %s29, 0
    %p525 = por %p523, %p524
    %p526 = scmp.ne.s32.totalorder %s515, %s518
    %p527 = scmp.eq.s32.totalorder %s34, 1
    %p528 = por %p526, %p527
    %p529 = scmp.ne.s32.totalorder %s518, %s519
    %p530 = scmp.eq.s32.totalorder %s34, 0
    %p531 = por %p529, %p530
    %p532 = scmp.ne.s32.totalorder %s518, %s519
    %p533 = scmp.eq.s32.totalorder %s35, 1
    %p534 = por %p532, %p533
    %p536 = scmp.ne.s32.totalorder %s519, %s535
    %p537 = scmp.eq.s32.totalorder %s35, 0
    %p538 = por %p536, %p537
    %s539 = ssub.s32 %s29, %s36
    %p540 = scmp.eq.s32.totalorder %s539, 0
    %s542 = sadd.s32 %s541, 1
    %s543 = scalar_select %p540, %s541, %s542
    %p546 = pneg %p540
    %p547 = scmp.eq.s32.totalorder %s29, 1
    %p548 = por %p546, %p547
    %p549 = scmp.ne.s32.totalorder %s541, %s544
    %p550 = scmp.eq.s32.totalorder %s29, 0
    %p551 = por %p549, %p550
    %p552 = scmp.ne.s32.totalorder %s541, %s544
    %p553 = scmp.eq.s32.totalorder %s34, 1
    %p554 = por %p552, %p553
    %p555 = scmp.ne.s32.totalorder %s544, %s545
    %p556 = scmp.eq.s32.totalorder %s34, 0
    %p557 = por %p555, %p556
    %p558 = scmp.ne.s32.totalorder %s544, %s545
    %p559 = scmp.eq.s32.totalorder %s35, 1
    %p560 = por %p558, %p559
    %p562 = scmp.ne.s32.totalorder %s545, %s561
    %p563 = scmp.eq.s32.totalorder %s35, 0
    %p564 = por %p562, %p563
    %p565 = scmp.le.s32.totalorder 1, %s29
    %p566 = scmp.lt.s32.totalorder %s29, 3
    %p567 = pnand %p565, %p566
    %p568 = pneg %p567
    // Predicated region
    $region9: #{gcn_forward.1} parent=5 // pred_check
      _
    $region10: #{gcn_forward.1} parent=5 // pred_check_branch
      %570 = sbr.rel (%p567) target = $region12
    $region11: #{gcn_forward.1} parent=5 // pred_region
      %s571 = ssub.s32 %s29, 1
      // Predicated region
      $region13: #{gcn_forward.1} parent=11 // pred_check
        %p572 = pneg %p232
      $region14: #{gcn_forward.1} parent=11 // pred_check_branch
        %574 = sbr.rel (%p572) target = $region16
      $region15: #{gcn_forward.1} parent=11 // pred_region
        _
      $region16: #{gcn_forward.1} parent=11 // pred_fallthru
        _
      // Predicated region
      $region17: #{gcn_forward.1} parent=11 // pred_check
        %p575 = pneg %p253
      $region18: #{gcn_forward.1} parent=11 // pred_check_branch
        %577 = sbr.rel (%p575) target = $region20
      $region19: #{gcn_forward.1} parent=11 // pred_region
        _
      $region20: #{gcn_forward.1} parent=11 // pred_fallthru
        _
      // Predicated region
      $region21: #{gcn_forward.1} parent=11 // pred_check
        %p578 = pneg %p274
      $region22: #{gcn_forward.1} parent=11 // pred_check_branch
        %580 = sbr.rel (%p578) target = $region24
      $region23: #{gcn_forward.1} parent=11 // pred_region
        _
      $region24: #{gcn_forward.1} parent=11 // pred_fallthru
        _
      // Predicated region
      $region25: #{gcn_forward.1} parent=11 // pred_check
        %p581 = pneg %p295
      $region26: #{gcn_forward.1} parent=11 // pred_check_branch
        %583 = sbr.rel (%p581) target = $region28
      $region27: #{gcn_forward.1} parent=11 // pred_region
        _
      $region28: #{gcn_forward.1} parent=11 // pred_fallthru
        _
      // Predicated region
      $region29: #{gcn_forward.1} parent=11 // pred_check
        %p584 = pneg %p316
      $region30: #{gcn_forward.1} parent=11 // pred_check_branch
        %586 = sbr.rel (%p584) target = $region32
      $region31: #{gcn_forward.1} parent=11 // pred_region
        _
      $region32: #{gcn_forward.1} parent=11 // pred_fallthru
        _
      // Predicated region
      $region33: #{gcn_forward.1} parent=11 // pred_check
        %p587 = pneg %p337
      $region34: #{gcn_forward.1} parent=11 // pred_check_branch
        %589 = sbr.rel (%p587) target = $region36
      $region35: #{gcn_forward.1} parent=11 // pred_region
        _
      $region36: #{gcn_forward.1} parent=11 // pred_fallthru
        _
      // Predicated region
      $region37: #{gcn_forward.1} parent=11 // pred_check
        %p590 = pneg %p358
      $region38: #{gcn_forward.1} parent=11 // pred_check_branch
        %592 = sbr.rel (%p590) target = $region40
      $region39: #{gcn_forward.1} parent=11 // pred_region
        _
      $region40: #{gcn_forward.1} parent=11 // pred_fallthru
        _
      // Predicated region
      $region41: #{gcn_forward.1} parent=11 // pred_check
        %p593 = pneg %p379
      $region42: #{gcn_forward.1} parent=11 // pred_check_branch
        %595 = sbr.rel (%p593) target = $region44
      $region43: #{gcn_forward.1} parent=11 // pred_region
        _
      $region44: #{gcn_forward.1} parent=11 // pred_fallthru
        _
      // Predicated region
      $region45: #{gcn_forward.1} parent=11 // pred_check
        %p596 = pneg %p400
      $region46: #{gcn_forward.1} parent=11 // pred_check_branch
        %598 = sbr.rel (%p596) target = $region48
      $region47: #{gcn_forward.1} parent=11 // pred_region
        _
      $region48: #{gcn_forward.1} parent=11 // pred_fallthru
        _
      // Predicated region
      $region49: #{gcn_forward.1} parent=11 // pred_check
        %p599 = pneg %p421
      $region50: #{gcn_forward.1} parent=11 // pred_check_branch
        %601 = sbr.rel (%p599) target = $region52
      $region51: #{gcn_forward.1} parent=11 // pred_region
        _
      $region52: #{gcn_forward.1} parent=11 // pred_fallthru
        _
      // Predicated region
      $region53: #{gcn_forward.1} parent=11 // pred_check
        %p602 = pneg %p442
      $region54: #{gcn_forward.1} parent=11 // pred_check_branch
        %604 = sbr.rel (%p602) target = $region56
      $region55: #{gcn_forward.1} parent=11 // pred_region
        _
      $region56: #{gcn_forward.1} parent=11 // pred_fallthru
        _
      // Predicated region
      $region57: #{gcn_forward.1} parent=11 // pred_check
        %p605 = pneg %p463
      $region58: #{gcn_forward.1} parent=11 // pred_check_branch
        %607 = sbr.rel (%p605) target = $region60
      $region59: #{gcn_forward.1} parent=11 // pred_region
        _
      $region60: #{gcn_forward.1} parent=11 // pred_fallthru
        _
      // Predicated region
      $region61: #{gcn_forward.1} parent=11 // pred_check
        %p608 = pneg %p484
      $region62: #{gcn_forward.1} parent=11 // pred_check_branch
        %610 = sbr.rel (%p608) target = $region64
      $region63: #{gcn_forward.1} parent=11 // pred_region
        _
      $region64: #{gcn_forward.1} parent=11 // pred_fallthru
        _
      // Predicated region
      $region65: #{gcn_forward.1} parent=11 // pred_check
        %p611 = pneg %p505
      $region66: #{gcn_forward.1} parent=11 // pred_check_branch
        %613 = sbr.rel (%p611) target = $region68
      $region67: #{gcn_forward.1} parent=11 // pred_region
        _
      $region68: #{gcn_forward.1} parent=11 // pred_fallthru
        _
    $region12: #{gcn_forward.1} parent=5 // pred_fallthru
      _
    %p614 = scmp.lt.s32.totalorder %s29, 2
    // Predicated region
    $region69: #{gcn_forward.1} parent=5 // pred_check
      %p615 = pneg %p614
    $region70: #{gcn_forward.1} parent=5 // pred_check_branch
      %617 = sbr.rel (%p615) target = $region72
    $region71: #{gcn_forward.1} parent=5 // pred_region
      // Predicated region
      $region73: #{gcn_forward.1} parent=71 // pred_check
        %p618 = pneg %p49
      $region74: #{gcn_forward.1} parent=71 // pred_check_branch
        %620 = sbr.rel (%p618) target = $region76
      $region75: #{gcn_forward.1} parent=71 // pred_region
        %p621 = scmp.lt.s32.totalorder %s29, 1
        %s622 = scalar_select %p621, %s29, 1
        %s623 = smul.addr %s622, 2
        %s624 = smul.addr %s623, 8
        %s625 = scalar_lea.vmem %s0, %s624
      $region76: #{gcn_forward.1} parent=71 // pred_fallthru
        _
      // Predicated region
      $region77: #{gcn_forward.1} parent=71 // pred_check
        %p626 = pneg %p75
      $region78: #{gcn_forward.1} parent=71 // pred_check_branch
        %628 = sbr.rel (%p626) target = $region80
      $region79: #{gcn_forward.1} parent=71 // pred_region
        %p629 = scmp.lt.s32.totalorder %s29, 1
        %s630 = scalar_select %p629, %s29, 1
        %s631 = smul.addr %s630, 2
        %s632 = smul.addr %s631, 8
        %s633 = scalar_lea.vmem %s1, %s632
      $region80: #{gcn_forward.1} parent=71 // pred_fallthru
        _
      // Predicated region
      $region81: #{gcn_forward.1} parent=71 // pred_check
        %p634 = pneg %p101
      $region82: #{gcn_forward.1} parent=71 // pred_check_branch
        %636 = sbr.rel (%p634) target = $region84
      $region83: #{gcn_forward.1} parent=71 // pred_region
        %p637 = scmp.lt.s32.totalorder %s29, 1
        %s638 = scalar_select %p637, %s29, 1
        %s639 = smul.addr %s638, 2
        %s640 = smul.addr %s639, 8
        %s641 = scalar_lea.vmem %s2, %s640
      $region84: #{gcn_forward.1} parent=71 // pred_fallthru
        _
      // Predicated region
      $region85: #{gcn_forward.1} parent=71 // pred_check
        %p642 = pneg %p127
      $region86: #{gcn_forward.1} parent=71 // pred_check_branch
        %644 = sbr.rel (%p642) target = $region88
      $region87: #{gcn_forward.1} parent=71 // pred_region
        %p645 = scmp.lt.s32.totalorder %s29, 1
        %s646 = scalar_select %p645, %s29, 1
        %s647 = smul.addr %s646, 2
        %s648 = scalar_lea.vmem %s3, %s647
      $region88: #{gcn_forward.1} parent=71 // pred_fallthru
        _
      // Predicated region
      $region89: #{gcn_forward.1} parent=71 // pred_check
        %p649 = pneg %p153
      $region90: #{gcn_forward.1} parent=71 // pred_check_branch
        %651 = sbr.rel (%p649) target = $region92
      $region91: #{gcn_forward.1} parent=71 // pred_region
        %p652 = scmp.lt.s32.totalorder %s29, 1
        %s653 = scalar_select %p652, %s29, 1
        %s654 = smul.addr %s653, 2
        %s655 = smul.addr %s654, 8
        %s656 = scalar_lea.vmem %s4, %s655
      $region92: #{gcn_forward.1} parent=71 // pred_fallthru
        _
      // Predicated region
      $region93: #{gcn_forward.1} parent=71 // pred_check
        %p657 = pneg %p179
      $region94: #{gcn_forward.1} parent=71 // pred_check_branch
        %659 = sbr.rel (%p657) target = $region96
      $region95: #{gcn_forward.1} parent=71 // pred_region
        %p660 = scmp.lt.s32.totalorder %s29, 1
        %s661 = scalar_select %p660, %s29, 1
        %s662 = smul.addr %s661, 8
        %s663 = smul.addr %s662, 8
        %s664 = scalar_lea.vmem %s5, %s663
      $region96: #{gcn_forward.1} parent=71 // pred_fallthru
        _
      // Predicated region
      $region97: #{gcn_forward.1} parent=71 // pred_check
        %p665 = pneg %p205
      $region98: #{gcn_forward.1} parent=71 // pred_check_branch
        %667 = sbr.rel (%p665) target = $region100
      $region99: #{gcn_forward.1} parent=71 // pred_region
        %p668 = scmp.lt.s32.totalorder %s29, 1
        %s669 = scalar_select %p668, %s29, 1
        %s670 = smul.addr %s669, 2
        %s671 = scalar_lea.vmem %s6, %s670
      $region100: #{gcn_forward.1} parent=71 // pred_fallthru
        _
    $region72: #{gcn_forward.1} parent=5 // pred_fallthru
      _
    %p672 = scmp.le.s32.totalorder 1, %s29
    %p673 = scmp.lt.s32.totalorder %s29, 3
    %p674 = pnand %p672, %p673
    %p675 = pneg %p674
    // Predicated region
    $region101: #{gcn_forward.1} parent=5 // pred_check
      _
    $region102: #{gcn_forward.1} parent=5 // pred_check_branch
      %677 = sbr.rel (%p674) target = $region104
    $region103: #{gcn_forward.1} parent=5 // pred_region
      %s678 = ssub.s32 %s29, 1
      %p679 = scmp.lt.s32.totalorder %s34, 1
      %s680 = scalar_select %p679, %s34, 1
      %s681 = smul.addr %s680, 2
      %s682 = smul.addr %s681, 8
      %s683 = scalar_lea.vmem %s0, %s682
      %p684 = pneg %p55
      %p685 = pneg %p52
      %p686 = scmp.lt.s32.totalorder %s34, 1
      %s687 = scalar_select %p686, %s34, 1
      %s688 = smul.addr %s687, 2
      %s689 = smul.addr %s688, 8
      %s690 = scalar_lea.vmem %s1, %s689
      %p691 = pneg %p81
      %p692 = pneg %p78
      %p693 = scmp.lt.s32.totalorder %s34, 1
      %s694 = scalar_select %p693, %s34, 1
      %s695 = smul.addr %s694, 2
      %s696 = smul.addr %s695, 8
      %s697 = scalar_lea.vmem %s2, %s696
      %p698 = pneg %p107
      %p699 = pneg %p104
      %p700 = scmp.lt.s32.totalorder %s34, 1
      %s701 = scalar_select %p700, %s34, 1
      %s702 = smul.addr %s701, 2
      %s703 = scalar_lea.vmem %s3, %s702
      %p704 = pneg %p133
      %p705 = pneg %p130
      %p706 = scmp.lt.s32.totalorder %s34, 1
      %s707 = scalar_select %p706, %s34, 1
      %s708 = smul.addr %s707, 2
      %s709 = smul.addr %s708, 8
      %s710 = scalar_lea.vmem %s4, %s709
      %p711 = pneg %p159
      %p712 = pneg %p156
      %p713 = scmp.lt.s32.totalorder %s34, 1
      %s714 = scalar_select %p713, %s34, 1
      %s715 = smul.addr %s714, 8
      %s716 = smul.addr %s715, 8
      %s717 = scalar_lea.vmem %s5, %s716
      %p718 = pneg %p185
      %p719 = pneg %p182
      %p720 = scmp.lt.s32.totalorder %s34, 1
      %s721 = scalar_select %p720, %s34, 1
      %s722 = smul.addr %s721, 2
      %s723 = scalar_lea.vmem %s6, %s722
      %p724 = pneg %p211
      %p725 = pneg %p208
      %p726 = pneg %p232
      %p727 = pneg %p229
      %p728 = pneg %p253
      %p729 = pneg %p250
      %p730 = pneg %p274
      %p731 = pneg %p271
      %p732 = pneg %p295
      %p733 = pneg %p292
      %p734 = pneg %p316
      %p735 = pneg %p313
      %p736 = pneg %p337
      %p737 = pneg %p334
      %p738 = pneg %p358
      %p739 = pneg %p355
      %p740 = pneg %p379
      %p741 = pneg %p376
      %p742 = pneg %p400
      %p743 = pneg %p397
      %p744 = pneg %p421
      %p745 = pneg %p418
      %p746 = pneg %p442
      %p747 = pneg %p439
      %p748 = pneg %p463
      %p749 = pneg %p460
      %p750 = pneg %p484
      %p751 = pneg %p481
      %p752 = pneg %p505
      %p753 = pneg %p502
      %p754 = pneg %p531
      %p755 = pneg %p528
      %p756 = scmp.lt.s32.totalorder %s34, 1
      %s757 = scalar_select %p756, %s34, 1
      %s758 = smul.addr %s757, 2
      %s759 = scalar_lea.vmem %s21, %s758
      %p760 = pneg %p557
      %p761 = pneg %p554
      %p762 = scmp.lt.s32.totalorder %s34, 1
      %s763 = scalar_select %p762, %s34, 1
      %s764 = smul.addr %s763, 2
      %s765 = scalar_lea.vmem %s22, %s764
      %p766 = scmp.lt.s32.totalorder %s34, 1
      %s767 = scalar_select %p766, %s34, 1
      %s768 = smul.addr %s767, 2
      %s769 = smul.addr %s768, 8
      %s770 = scalar_lea.vmem %s0, %s769
      %p771 = scmp.lt.s32.totalorder %s34, 1
      %s772 = scalar_select %p771, %s34, 1
      %s773 = smul.addr %s772, 2
      %s774 = smul.addr %s773, 8
      %s775 = scalar_lea.vmem %s1, %s774
      %p776 = scmp.lt.s32.totalorder %s34, 1
      %s777 = scalar_select %p776, %s34, 1
      %s778 = smul.addr %s777, 2
      %s779 = smul.addr %s778, 8
      %s780 = scalar_lea.vmem %s2, %s779
      %p781 = scmp.lt.s32.totalorder %s34, 1
      %s782 = scalar_select %p781, %s34, 1
      %s783 = smul.addr %s782, 2
      %s784 = scalar_lea.vmem %s3, %s783
      %p785 = scmp.lt.s32.totalorder %s34, 1
      %s786 = scalar_select %p785, %s34, 1
      %s787 = smul.addr %s786, 2
      %s788 = smul.addr %s787, 8
      %s789 = scalar_lea.vmem %s4, %s788
      %p790 = scmp.lt.s32.totalorder %s34, 1
      %s791 = scalar_select %p790, %s34, 1
      %s792 = smul.addr %s791, 8
      %s793 = smul.addr %s792, 8
      %s794 = scalar_lea.vmem %s5, %s793
      %p795 = scmp.lt.s32.totalorder %s34, 1
      %s796 = scalar_select %p795, %s34, 1
      %s797 = smul.addr %s796, 2
      %s798 = scalar_lea.vmem %s6, %s797
      %p799 = scmp.lt.s32.totalorder %s34, 1
      %s800 = scalar_select %p799, %s34, 1
      %s801 = smul.addr %s800, 2
      %s802 = scalar_lea.vmem %s21, %s801
      %p803 = scmp.lt.s32.totalorder %s34, 1
      %s804 = scalar_select %p803, %s34, 1
      %s805 = smul.addr %s804, 2
      %s806 = scalar_lea.vmem %s22, %s805
      %v807 = vld [vmem:[%s770] sm:$0xff]
      %v808 = vld [vmem:[%s770 + $0x8] sm:$0xff]
      %v809 = vld [vmem:[%s780] sm:$0xff]
      %v810 = vld [vmem:[%s780 + $0x8] sm:$0xff]
      %v811 = vld [vmem:[%s775] sm:$0xff]
      %v812 = vld [vmem:[%s775 + $0x8] sm:$0xff]
      %v813 = vld [vmem:[%s7] sm:$0xff]
      %v814 = vld [vmem:[%s7 + $0x8] sm:$0xff]
      %v815 = vld [vmem:[%s7 + $0x10] sm:$0xff]
      %v816 = vld [vmem:[%s7 + $0x18] sm:$0xff]
      %v817 = vld [vmem:[%s7 + $0x20] sm:$0xff]
      %v818 = vld [vmem:[%s7 + $0x28] sm:$0x7]
      %v819 = vld [vmem:[%s8] sm:$0x1]
      %v821 = vperm.slane %v819, 0
      %vm823 = vcmask 351232
      %v825 = vsel %vm823, %v811, 0
      %v828 = vsel %vm823, %v812, 0
      %vm830 = vcmask 1042432
      %v832 = vsel %vm830, %v818, 0
      %834 = vmatpush.msra.mxu0 0.0
      %835 = vmatpush.msra.mxu0 0.0
      %836 = vmatpush.msra.mxu0 0.0
      %837 = vmatpush.msra.mxu0 0.0
      %838 = vmatpush.msra.mxu0 0.0
      %839 = vmatpush.msra.mxu0 0.0
      %840 = vmatpush.msra.mxu0 0.0
      %841 = vmatpush.msra.mxu0 0.0
      %842 = vmatpush.msra.mxu0 0.0
      %843 = vmatpush.msra.mxu0 0.0
      %844 = vmatpush.msra.mxu0 %v832
      %845 = vmatpush.msra.mxu0 %v817
      %846 = vmatpush.msra.mxu0 %v816
      %847 = vmatpush.msra.mxu0 %v815
      %848 = vmatpush.msra.mxu0 %v814
      %849 = vmatpush.msra.mxu0 %v813
      %850 = vmatmul.f32.gmra.mxu0 %v825
      %v851 = vpop.f32.mrf.mxu0
      %v852 = vadd.f32 %v821, %v851
      %853 = vmatmul.f32.gmra.mxu0 %v828
      %v854 = vpop.f32.mrf.mxu0
      %v855 = vadd.f32 %v821, %v854
      %856 = vdwg.mxu0
      %v857 = vmax.f32 %v852, 0.0
      %v858 = vmax.f32 %v855, 0.0
      %vm859 = vcmask 130048
      %v861 = vsel %vm859, %v807, 0
      %v864 = vsel %vm859, %v808, 0
      %866 = vmatpush.msra.mxu0 0.0
      %867 = vmatpush.msra.mxu0 0.0
      %868 = vmatpush.msra.mxu0 0.0
      %869 = vmatpush.msra.mxu0 0.0
      %870 = vmatpush.msra.mxu0 0.0
      %871 = vmatpush.msra.mxu0 0.0
      %872 = vmatpush.msra.mxu0 0.0
      %873 = vmatpush.msra.mxu0 0.0
      %874 = vmatpush.msra.mxu0 0.0
      %875 = vmatpush.msra.mxu0 0.0
      %876 = vmatpush.msra.mxu0 0.0
      %877 = vmatpush.msra.mxu0 0.0
      %878 = vmatpush.msra.mxu0 0.0
      %879 = vmatpush.msra.mxu0 0.0
      %880 = vmatpush.msra.mxu0 %v858
      %881 = vmatpush.msra.mxu0 %v857
      %882 = vmatmul.f32.gmra.mxu0 %v861
      %v883 = vpop.f32.mrf.mxu0
      %v884 = vadd.f32 %v857, %v883
      %885 = vmatmul.f32.gmra.mxu0 %v864
      %v886 = vpop.f32.mrf.mxu0
      %v887 = vadd.f32 %v858, %v886
      %888 = vdwg.mxu0
      %v889 = vld [vmem:[%s9] sm:$0xff]
      %v890 = vld [vmem:[%s9 + $0x8] sm:$0xff]
      %v891 = vld [vmem:[%s9 + $0x10] sm:$0xff]
      %v892 = vld [vmem:[%s9 + $0x18] sm:$0xff]
      %v893 = vld [vmem:[%s9 + $0x20] sm:$0xff]
      %v894 = vld [vmem:[%s9 + $0x28] sm:$0xff]
      %v895 = vld [vmem:[%s9 + $0x30] sm:$0xff]
      %v896 = vld [vmem:[%s9 + $0x38] sm:$0xff]
      %v897 = vld [vmem:[%s9 + $0x40] sm:$0xff]
      %v898 = vld [vmem:[%s9 + $0x48] sm:$0xff]
      %v899 = vld [vmem:[%s9 + $0x50] sm:$0xff]
      %v900 = vld [vmem:[%s9 + $0x58] sm:$0xff]
      %v901 = vld [vmem:[%s9 + $0x60] sm:$0xff]
      %v902 = vld [vmem:[%s9 + $0x68] sm:$0xff]
      %v903 = vld [vmem:[%s9 + $0x70] sm:$0xff]
      %v904 = vld [vmem:[%s9 + $0x78] sm:$0xff]
      %v905 = vld [vmem:[%s10] sm:$0x3f]
      %vm906 = vcmask 48128
      %v908 = vsel %vm906, %v809, 0
      %v911 = vsel %vm906, %v810, 0
      %vm913 = vcmask 1045504
      %v915 = vsel %vm913, %v905, 0
      %917 = vmatpush.msra.mxu0 0.0
      %918 = vmatpush.msra.mxu0 0.0
      %919 = vmatpush.msra.mxu0 0.0
      %920 = vmatpush.msra.mxu0 0.0
      %921 = vmatpush.msra.mxu0 0.0
      %922 = vmatpush.msra.mxu0 0.0
      %923 = vmatpush.msra.mxu0 0.0
      %924 = vmatpush.msra.mxu0 0.0
      %925 = vmatpush.msra.mxu0 0.0
      %926 = vmatpush.msra.mxu0 0.0
      %927 = vmatpush.msra.mxu0 0.0
      %928 = vmatpush.msra.mxu0 0.0
      %929 = vmatpush.msra.mxu0 0.0
      %930 = vmatpush.msra.mxu0 0.0
      %931 = vmatpush.msra.mxu0 0.0
      %932 = vmatpush.msra.mxu0 %v915
      %933 = vmatmul.f32.gmra.mxu0 %v908
      %v934 = vpop.f32.mrf.mxu0
      %v935 = vadd.f32 0.0, %v934
      %936 = vmatmul.f32.gmra.mxu0 %v911
      %v937 = vpop.f32.mrf.mxu0
      %v938 = vadd.f32 0.0, %v937
      %939 = vdwg.mxu0
      %940 = vmatpush.msra.mxu0 %v904
      %941 = vmatpush.msra.mxu0 %v903
      %942 = vmatpush.msra.mxu0 %v902
      %943 = vmatpush.msra.mxu0 %v901
      %944 = vmatpush.msra.mxu0 %v900
      %945 = vmatpush.msra.mxu0 %v899
      %946 = vmatpush.msra.mxu0 %v898
      %947 = vmatpush.msra.mxu0 %v897
      %948 = vmatpush.msra.mxu0 %v896
      %949 = vmatpush.msra.mxu0 %v895
      %950 = vmatpush.msra.mxu0 %v894
      %951 = vmatpush.msra.mxu0 %v893
      %952 = vmatpush.msra.mxu0 %v892
      %953 = vmatpush.msra.mxu0 %v891
      %954 = vmatpush.msra.mxu0 %v890
      %955 = vmatpush.msra.mxu0 %v889
      %956 = vmatmul.f32.gmra.mxu0 %v884
      %v957 = vpop.f32.mrf.mxu0
      %v958 = vadd.f32 %v935, %v957
      %959 = vmatmul.f32.gmra.mxu0 %v887
      %v960 = vpop.f32.mrf.mxu0
      %v961 = vadd.f32 %v938, %v960
      %962 = vdwg.mxu0
      %v963 = vld [vmem:[%s11] sm:$0x1]
      %v965 = vperm.slane %v963, 0
      %v967 = vadd.f32 %v958, %v965
      %v968 = vadd.f32 %v961, %v965
      %v969 = vmax.f32 %v967, 0.0
      %v970 = vmax.f32 %v968, 0.0
      %v971 = vld [vmem:[%s12] sm:$0xff]
      %v972 = vld [vmem:[%s12 + $0x8] sm:$0xff]
      %v973 = vld [vmem:[%s12 + $0x10] sm:$0xff]
      %v974 = vld [vmem:[%s12 + $0x18] sm:$0xff]
      %v975 = vld [vmem:[%s12 + $0x20] sm:$0xff]
      %v976 = vld [vmem:[%s12 + $0x28] sm:$0xff]
      %v977 = vld [vmem:[%s12 + $0x30] sm:$0xff]
      %v978 = vld [vmem:[%s12 + $0x38] sm:$0xff]
      %v979 = vld [vmem:[%s12 + $0x40] sm:$0xff]
      %v980 = vld [vmem:[%s12 + $0x48] sm:$0xff]
      %v981 = vld [vmem:[%s12 + $0x50] sm:$0xff]
      %v982 = vld [vmem:[%s12 + $0x58] sm:$0xff]
      %v983 = vld [vmem:[%s12 + $0x60] sm:$0xff]
      %v984 = vld [vmem:[%s12 + $0x68] sm:$0xff]
      %v985 = vld [vmem:[%s12 + $0x70] sm:$0xff]
      %v986 = vld [vmem:[%s12 + $0x78] sm:$0xff]
      %v987 = vld [vmem:[%s13] sm:$0x3f]
      %v989 = vsel %vm913, %v987, 0
      %991 = vmatpush.msra.mxu0 0.0
      %992 = vmatpush.msra.mxu0 0.0
      %993 = vmatpush.msra.mxu0 0.0
      %994 = vmatpush.msra.mxu0 0.0
      %995 = vmatpush.msra.mxu0 0.0
      %996 = vmatpush.msra.mxu0 0.0
      %997 = vmatpush.msra.mxu0 0.0
      %998 = vmatpush.msra.mxu0 0.0
      %999 = vmatpush.msra.mxu0 0.0
      %1000 = vmatpush.msra.mxu0 0.0
      %1001 = vmatpush.msra.mxu0 0.0
      %1002 = vmatpush.msra.mxu0 0.0
      %1003 = vmatpush.msra.mxu0 0.0
      %1004 = vmatpush.msra.mxu0 0.0
      %1005 = vmatpush.msra.mxu0 0.0
      %1006 = vmatpush.msra.mxu0 %v989
      %1007 = vmatmul.f32.gmra.mxu0 %v908
      %v1008 = vpop.f32.mrf.mxu0
      %v1009 = vadd.f32 0.0, %v1008
      %1010 = vmatmul.f32.gmra.mxu0 %v911
      %v1011 = vpop.f32.mrf.mxu0
      %v1012 = vadd.f32 0.0, %v1011
      %1013 = vdwg.mxu0
      %1014 = vmatpush.msra.mxu0 %v986
      %1015 = vmatpush.msra.mxu0 %v985
      %1016 = vmatpush.msra.mxu0 %v984
      %1017 = vmatpush.msra.mxu0 %v983
      %1018 = vmatpush.msra.mxu0 %v982
      %1019 = vmatpush.msra.mxu0 %v981
      %1020 = vmatpush.msra.mxu0 %v980
      %1021 = vmatpush.msra.mxu0 %v979
      %1022 = vmatpush.msra.mxu0 %v978
      %1023 = vmatpush.msra.mxu0 %v977
      %1024 = vmatpush.msra.mxu0 %v976
      %1025 = vmatpush.msra.mxu0 %v975
      %1026 = vmatpush.msra.mxu0 %v974
      %1027 = vmatpush.msra.mxu0 %v973
      %1028 = vmatpush.msra.mxu0 %v972
      %1029 = vmatpush.msra.mxu0 %v971
      %1030 = vmatmul.f32.gmra.mxu0 %v969
      %v1031 = vpop.f32.mrf.mxu0
      %v1032 = vadd.f32 %v1009, %v1031
      %1033 = vmatmul.f32.gmra.mxu0 %v970
      %v1034 = vpop.f32.mrf.mxu0
      %v1035 = vadd.f32 %v1012, %v1034
      %1036 = vdwg.mxu0
      %v1037 = vld [vmem:[%s14] sm:$0x1]
      %v1039 = vperm.slane %v1037, 0
      %v1041 = vadd.f32 %v1032, %v1039
      %v1042 = vadd.f32 %v1035, %v1039
      %v1043 = vtanh.pop %v1041
      %v1044 = vtanh.pop %v1042
      %v1045 = vld [vmem:[%s784] sm:$0x3]
      %v1047 = vsel %vm859, %v1045, 0
      %1049 = vmatpush.msra.mxu0 0.0
      %1050 = vmatpush.msra.mxu0 0.0
      %1051 = vmatpush.msra.mxu0 0.0
      %1052 = vmatpush.msra.mxu0 0.0
      %1053 = vmatpush.msra.mxu0 0.0
      %1054 = vmatpush.msra.mxu0 0.0
      %1055 = vmatpush.msra.mxu0 0.0
      %1056 = vmatpush.msra.mxu0 0.0
      %1057 = vmatpush.msra.mxu0 0.0
      %1058 = vmatpush.msra.mxu0 0.0
      %1059 = vmatpush.msra.mxu0 0.0
      %1060 = vmatpush.msra.mxu0 0.0
      %1061 = vmatpush.msra.mxu0 0.0
      %1062 = vmatpush.msra.mxu0 0.0
      %1063 = vmatpush.msra.mxu0 %v1044
      %1064 = vmatpush.msra.mxu0 %v1043
      %1065 = vmatmul.f32.gmra.mxu0 %v1047
      %v1066 = vpop.f32.mrf.mxu0
      %v1067 = vadd.f32 0.0, %v1066
      %1068 = vdwg.mxu0
      %vm1069 = vcmask 254976
      %1070 = vst.msk [vmem:[%s802] sm:$0x3] %vm1069, %v1067
      %v1071 = vld [vmem:[%s789] sm:$0xff]
      %v1072 = vld [vmem:[%s789 + $0x8] sm:$0xff]
      %v1073 = vld [vmem:[%s794] sm:$0xff]
      %v1074 = vld [vmem:[%s794 + $0x8] sm:$0xff]
      %v1075 = vld [vmem:[%s794 + $0x10] sm:$0xff]
      %v1076 = vld [vmem:[%s794 + $0x18] sm:$0xff]
      %v1077 = vld [vmem:[%s794 + $0x20] sm:$0xff]
      %v1078 = vld [vmem:[%s794 + $0x28] sm:$0xff]
      %v1079 = vld [vmem:[%s794 + $0x30] sm:$0xff]
      %v1080 = vld [vmem:[%s794 + $0x38] sm:$0xff]
      %v1081 = vld [vmem:[%s15] sm:$0xff]
      %v1082 = vld [vmem:[%s15 + $0x8] sm:$0xff]
      %v1083 = vld [vmem:[%s15 + $0x10] sm:$0xff]
      %v1084 = vld [vmem:[%s15 + $0x18] sm:$0xff]
      %v1085 = vld [vmem:[%s15 + $0x20] sm:$0xff]
      %v1086 = vld [vmem:[%s15 + $0x28] sm:$0xff]
      %v1087 = vld [vmem:[%s15 + $0x30] sm:$0xff]
      %v1088 = vld [vmem:[%s15 + $0x38] sm:$0xff]
      %v1089 = vld [vmem:[%s15 + $0x40] sm:$0xff]
      %v1090 = vld [vmem:[%s15 + $0x48] sm:$0xff]
      %v1091 = vld [vmem:[%s15 + $0x50] sm:$0xff]
      %v1092 = vld [vmem:[%s15 + $0x58] sm:$0xff]
      %v1093 = vld [vmem:[%s15 + $0x60] sm:$0xff]
      %v1094 = vld [vmem:[%s15 + $0x68] sm:$0xff]
      %v1095 = vld [vmem:[%s15 + $0x70] sm:$0xff]
      %v1096 = vld [vmem:[%s15 + $0x78] sm:$0xff]
      %v1097 = vld [vmem:[%s15 + $0x80] sm:$0xff]
      %v1098 = vld [vmem:[%s15 + $0x88] sm:$0xff]
      %v1099 = vld [vmem:[%s15 + $0x90] sm:$0xff]
      %v1100 = vld [vmem:[%s15 + $0x98] sm:$0xff]
      %v1101 = vld [vmem:[%s15 + $0xa0] sm:$0xff]
      %v1102 = vld [vmem:[%s15 + $0xa8] sm:$0xff]
      %v1103 = vld [vmem:[%s15 + $0xb0] sm:$0xff]
      %v1104 = vld [vmem:[%s15 + $0xb8] sm:$0xff]
      %v1105 = vld [vmem:[%s15 + $0xc0] sm:$0xff]
      %v1106 = vld [vmem:[%s15 + $0xc8] sm:$0xff]
      %v1107 = vld [vmem:[%s15 + $0xd0] sm:$0xff]
      %v1108 = vld [vmem:[%s15 + $0xd8] sm:$0xff]
      %v1109 = vld [vmem:[%s15 + $0xe0] sm:$0xff]
      %v1110 = vld [vmem:[%s15 + $0xe8] sm:$0xff]
      %v1111 = vld [vmem:[%s15 + $0xf0] sm:$0xff]
      %v1112 = vld [vmem:[%s15 + $0xf8] sm:$0xff]
      %v1113 = vld [vmem:[%s15 + $0x100] sm:$0xff]
      %v1114 = vld [vmem:[%s15 + $0x108] sm:$0xff]
      %v1115 = vld [vmem:[%s15 + $0x110] sm:$0xff]
      %v1116 = vld [vmem:[%s15 + $0x118] sm:$0xff]
      %v1117 = vld [vmem:[%s15 + $0x120] sm:$0xff]
      %v1118 = vld [vmem:[%s15 + $0x128] sm:$0xff]
      %v1119 = vld [vmem:[%s15 + $0x130] sm:$0xff]
      %v1120 = vld [vmem:[%s15 + $0x138] sm:$0xff]
      %v1121 = vld [vmem:[%s15 + $0x140] sm:$0xff]
      %v1122 = vld [vmem:[%s15 + $0x148] sm:$0xff]
      %v1123 = vld [vmem:[%s15 + $0x150] sm:$0xff]
      %v1124 = vld [vmem:[%s15 + $0x158] sm:$0xff]
      %v1125 = vld [vmem:[%s15 + $0x160] sm:$0xff]
      %v1126 = vld [vmem:[%s15 + $0x168] sm:$0xff]
      %v1127 = vld [vmem:[%s15 + $0x170] sm:$0xff]
      %v1128 = vld [vmem:[%s15 + $0x178] sm:$0xff]
      %v1129 = vld [vmem:[%s15 + $0x180] sm:$0xff]
      %v1130 = vld [vmem:[%s15 + $0x188] sm:$0xff]
      %v1131 = vld [vmem:[%s15 + $0x190] sm:$0xff]
      %v1132 = vld [vmem:[%s15 + $0x198] sm:$0xff]
      %v1133 = vld [vmem:[%s15 + $0x1a0] sm:$0xff]
      %v1134 = vld [vmem:[%s15 + $0x1a8] sm:$0xff]
      %v1135 = vld [vmem:[%s15 + $0x1b0] sm:$0xff]
      %v1136 = vld [vmem:[%s15 + $0x1b8] sm:$0xff]
      %v1137 = vld [vmem:[%s15 + $0x1c0] sm:$0xff]
      %v1138 = vld [vmem:[%s15 + $0x1c8] sm:$0xff]
      %v1139 = vld [vmem:[%s15 + $0x1d0] sm:$0xff]
      %v1140 = vld [vmem:[%s15 + $0x1d8] sm:$0xff]
      %v1141 = vld [vmem:[%s15 + $0x1e0] sm:$0xff]
      %v1142 = vld [vmem:[%s15 + $0x1e8] sm:$0xff]
      %v1143 = vld [vmem:[%s15 + $0x1f0] sm:$0xff]
      %v1144 = vld [vmem:[%s15 + $0x1f8] sm:$0xff]
      %v1145 = vld [vmem:[%s15 + $0x200] sm:$0xff]
      %v1146 = vld [vmem:[%s15 + $0x208] sm:$0xff]
      %v1147 = vld [vmem:[%s15 + $0x210] sm:$0xff]
      %v1148 = vld [vmem:[%s15 + $0x218] sm:$0xff]
      %v1149 = vld [vmem:[%s15 + $0x220] sm:$0xff]
      %v1150 = vld [vmem:[%s15 + $0x228] sm:$0xff]
      %v1151 = vld [vmem:[%s15 + $0x230] sm:$0xff]
      %v1152 = vld [vmem:[%s15 + $0x238] sm:$0xff]
      %v1153 = vld [vmem:[%s15 + $0x240] sm:$0xff]
      %v1154 = vld [vmem:[%s15 + $0x248] sm:$0xff]
      %v1155 = vld [vmem:[%s15 + $0x250] sm:$0xff]
      %v1156 = vld [vmem:[%s15 + $0x258] sm:$0xff]
      %v1157 = vld [vmem:[%s15 + $0x260] sm:$0xff]
      %v1158 = vld [vmem:[%s15 + $0x268] sm:$0xff]
      %v1159 = vld [vmem:[%s15 + $0x270] sm:$0xff]
      %v1160 = vld [vmem:[%s15 + $0x278] sm:$0xff]
      %v1161 = vld [vmem:[%s15 + $0x280] sm:$0xff]
      %v1162 = vld [vmem:[%s15 + $0x288] sm:$0xff]
      %v1163 = vld [vmem:[%s15 + $0x290] sm:$0xff]
      %v1164 = vld [vmem:[%s15 + $0x298] sm:$0xff]
      %v1165 = vld [vmem:[%s15 + $0x2a0] sm:$0xff]
      %v1166 = vld [vmem:[%s15 + $0x2a8] sm:$0xff]
      %v1167 = vld [vmem:[%s15 + $0x2b0] sm:$0xff]
      %v1168 = vld [vmem:[%s15 + $0x2b8] sm:$0xff]
      %v1169 = vld [vmem:[%s15 + $0x2c0] sm:$0xff]
      %v1170 = vld [vmem:[%s15 + $0x2c8] sm:$0xff]
      %v1171 = vld [vmem:[%s15 + $0x2d0] sm:$0xff]
      %v1172 = vld [vmem:[%s15 + $0x2d8] sm:$0xff]
      %v1173 = vld [vmem:[%s15 + $0x2e0] sm:$0xff]
      %v1174 = vld [vmem:[%s15 + $0x2e8] sm:$0xff]
      %v1175 = vld [vmem:[%s15 + $0x2f0] sm:$0xff]
      %v1176 = vld [vmem:[%s15 + $0x2f8] sm:$0xff]
      %v1177 = vld [vmem:[%s15 + $0x300] sm:$0xff]
      %v1178 = vld [vmem:[%s15 + $0x308] sm:$0xff]
      %v1179 = vld [vmem:[%s15 + $0x310] sm:$0xff]
      %v1180 = vld [vmem:[%s15 + $0x318] sm:$0xff]
      %v1181 = vld [vmem:[%s15 + $0x320] sm:$0xff]
      %v1182 = vld [vmem:[%s15 + $0x328] sm:$0xff]
      %v1183 = vld [vmem:[%s15 + $0x330] sm:$0xff]
      %v1184 = vld [vmem:[%s15 + $0x338] sm:$0xff]
      %v1185 = vld [vmem:[%s15 + $0x340] sm:$0xff]
      %v1186 = vld [vmem:[%s15 + $0x348] sm:$0xff]
      %v1187 = vld [vmem:[%s15 + $0x350] sm:$0xff]
      %v1188 = vld [vmem:[%s15 + $0x358] sm:$0xff]
      %v1189 = vld [vmem:[%s15 + $0x360] sm:$0xff]
      %v1190 = vld [vmem:[%s15 + $0x368] sm:$0xff]
      %v1191 = vld [vmem:[%s15 + $0x370] sm:$0xff]
      %v1192 = vld [vmem:[%s15 + $0x378] sm:$0xff]
      %v1193 = vld [vmem:[%s15 + $0x380] sm:$0xff]
      %v1194 = vld [vmem:[%s15 + $0x388] sm:$0xff]
      %v1195 = vld [vmem:[%s15 + $0x390] sm:$0xff]
      %v1196 = vld [vmem:[%s15 + $0x398] sm:$0xff]
      %v1197 = vld [vmem:[%s15 + $0x3a0] sm:$0xff]
      %v1198 = vld [vmem:[%s15 + $0x3a8] sm:$0xff]
      %v1199 = vld [vmem:[%s15 + $0x3b0] sm:$0xff]
      %v1200 = vld [vmem:[%s15 + $0x3b8] sm:$0xff]
      %v1201 = vld [vmem:[%s16] sm:$0x3]
      %v1203 = vperm.slane %v1201, 0
      %v1204 = vperm.slane %v1201, 1
      %vm1207 = vcmask 785408
      %v1209 = vsel %vm1207, %v1076, 0
      %v1212 = vsel %vm1207, %v1080, 0
      %1214 = vmatpush.msra.mxu0 %v1111
      %1215 = vmatpush.msra.mxu0 %v1109
      %1216 = vmatpush.msra.mxu0 %v1107
      %1217 = vmatpush.msra.mxu0 %v1105
      %1218 = vmatpush.msra.mxu0 %v1103
      %1219 = vmatpush.msra.mxu0 %v1101
      %1220 = vmatpush.msra.mxu0 %v1099
      %1221 = vmatpush.msra.mxu0 %v1097
      %1222 = vmatpush.msra.mxu0 %v1095
      %1223 = vmatpush.msra.mxu0 %v1093
      %1224 = vmatpush.msra.mxu0 %v1091
      %1225 = vmatpush.msra.mxu0 %v1089
      %1226 = vmatpush.msra.mxu0 %v1087
      %1227 = vmatpush.msra.mxu0 %v1085
      %1228 = vmatpush.msra.mxu0 %v1083
      %1229 = vmatpush.msra.mxu0 %v1081
      %1230 = vmatmul.f32.gmra.mxu0 %v1073
      %v1231 = vpop.f32.mrf.mxu0
      %v1232 = vadd.f32 %v1203, %v1231
      %1233 = vmatmul.f32.gmra.mxu0 %v1077
      %v1234 = vpop.f32.mrf.mxu0
      %v1235 = vadd.f32 %v1203, %v1234
      %1236 = vdwg.mxu0
      %1237 = vmatpush.msra.mxu0 %v1143
      %1238 = vmatpush.msra.mxu0 %v1141
      %1239 = vmatpush.msra.mxu0 %v1139
      %1240 = vmatpush.msra.mxu0 %v1137
      %1241 = vmatpush.msra.mxu0 %v1135
      %1242 = vmatpush.msra.mxu0 %v1133
      %1243 = vmatpush.msra.mxu0 %v1131
      %1244 = vmatpush.msra.mxu0 %v1129
      %1245 = vmatpush.msra.mxu0 %v1127
      %1246 = vmatpush.msra.mxu0 %v1125
      %1247 = vmatpush.msra.mxu0 %v1123
      %1248 = vmatpush.msra.mxu0 %v1121
      %1249 = vmatpush.msra.mxu0 %v1119
      %1250 = vmatpush.msra.mxu0 %v1117
      %1251 = vmatpush.msra.mxu0 %v1115
      %1252 = vmatpush.msra.mxu0 %v1113
      %1253 = vmatmul.f32.gmra.mxu0 %v1074
      %v1254 = vpop.f32.mrf.mxu0
      %v1255 = vadd.f32 %v1232, %v1254
      %1256 = vmatmul.f32.gmra.mxu0 %v1078
      %v1257 = vpop.f32.mrf.mxu0
      %v1258 = vadd.f32 %v1235, %v1257
      %1259 = vdwg.mxu0
      %1260 = vmatpush.msra.mxu0 %v1175
      %1261 = vmatpush.msra.mxu0 %v1173
      %1262 = vmatpush.msra.mxu0 %v1171
      %1263 = vmatpush.msra.mxu0 %v1169
      %1264 = vmatpush.msra.mxu0 %v1167
      %1265 = vmatpush.msra.mxu0 %v1165
      %1266 = vmatpush.msra.mxu0 %v1163
      %1267 = vmatpush.msra.mxu0 %v1161
      %1268 = vmatpush.msra.mxu0 %v1159
      %1269 = vmatpush.msra.mxu0 %v1157
      %1270 = vmatpush.msra.mxu0 %v1155
      %1271 = vmatpush.msra.mxu0 %v1153
      %1272 = vmatpush.msra.mxu0 %v1151
      %1273 = vmatpush.msra.mxu0 %v1149
      %1274 = vmatpush.msra.mxu0 %v1147
      %1275 = vmatpush.msra.mxu0 %v1145
      %1276 = vmatmul.f32.gmra.mxu0 %v1075
      %v1277 = vpop.f32.mrf.mxu0
      %v1278 = vadd.f32 %v1255, %v1277
      %1279 = vmatmul.f32.gmra.mxu0 %v1079
      %v1280 = vpop.f32.mrf.mxu0
      %v1281 = vadd.f32 %v1258, %v1280
      %1282 = vdwg.mxu0
      %1283 = vmatpush.msra.mxu0 0.0
      %1284 = vmatpush.msra.mxu0 0.0
      %1285 = vmatpush.msra.mxu0 0.0
      %1286 = vmatpush.msra.mxu0 0.0
      %1287 = vmatpush.msra.mxu0 %v1199
      %1288 = vmatpush.msra.mxu0 %v1197
      %1289 = vmatpush.msra.mxu0 %v1195
      %1290 = vmatpush.msra.mxu0 %v1193
      %1291 = vmatpush.msra.mxu0 %v1191
      %1292 = vmatpush.msra.mxu0 %v1189
      %1293 = vmatpush.msra.mxu0 %v1187
      %1294 = vmatpush.msra.mxu0 %v1185
      %1295 = vmatpush.msra.mxu0 %v1183
      %1296 = vmatpush.msra.mxu0 %v1181
      %1297 = vmatpush.msra.mxu0 %v1179
      %1298 = vmatpush.msra.mxu0 %v1177
      %1299 = vmatmul.f32.gmra.mxu0 %v1209
      %v1300 = vpop.f32.mrf.mxu0
      %v1301 = vadd.f32 %v1278, %v1300
      %1302 = vmatmul.f32.gmra.mxu0 %v1212
      %v1303 = vpop.f32.mrf.mxu0
      %v1304 = vadd.f32 %v1281, %v1303
      %1305 = vdwg.mxu0
      %1306 = vmatpush.msra.mxu0 %v1112
      %1307 = vmatpush.msra.mxu0 %v1110
      %1308 = vmatpush.msra.mxu0 %v1108
      %1309 = vmatpush.msra.mxu0 %v1106
      %1310 = vmatpush.msra.mxu0 %v1104
      %1311 = vmatpush.msra.mxu0 %v1102
      %1312 = vmatpush.msra.mxu0 %v1100
      %1313 = vmatpush.msra.mxu0 %v1098
      %1314 = vmatpush.msra.mxu0 %v1096
      %1315 = vmatpush.msra.mxu0 %v1094
      %1316 = vmatpush.msra.mxu0 %v1092
      %1317 = vmatpush.msra.mxu0 %v1090
      %1318 = vmatpush.msra.mxu0 %v1088
      %1319 = vmatpush.msra.mxu0 %v1086
      %1320 = vmatpush.msra.mxu0 %v1084
      %1321 = vmatpush.msra.mxu0 %v1082
      %1322 = vmatmul.f32.gmra.mxu0 %v1073
      %v1323 = vpop.f32.mrf.mxu0
      %v1324 = vadd.f32 %v1204, %v1323
      %1325 = vmatmul.f32.gmra.mxu0 %v1077
      %v1326 = vpop.f32.mrf.mxu0
      %v1327 = vadd.f32 %v1204, %v1326
      %1328 = vdwg.mxu0
      %1329 = vmatpush.msra.mxu0 %v1144
      %1330 = vmatpush.msra.mxu0 %v1142
      %1331 = vmatpush.msra.mxu0 %v1140
      %1332 = vmatpush.msra.mxu0 %v1138
      %1333 = vmatpush.msra.mxu0 %v1136
      %1334 = vmatpush.msra.mxu0 %v1134
      %1335 = vmatpush.msra.mxu0 %v1132
      %1336 = vmatpush.msra.mxu0 %v1130
      %1337 = vmatpush.msra.mxu0 %v1128
      %1338 = vmatpush.msra.mxu0 %v1126
      %1339 = vmatpush.msra.mxu0 %v1124
      %1340 = vmatpush.msra.mxu0 %v1122
      %1341 = vmatpush.msra.mxu0 %v1120
      %1342 = vmatpush.msra.mxu0 %v1118
      %1343 = vmatpush.msra.mxu0 %v1116
      %1344 = vmatpush.msra.mxu0 %v1114
      %1345 = vmatmul.f32.gmra.mxu0 %v1074
      %v1346 = vpop.f32.mrf.mxu0
      %v1347 = vadd.f32 %v1324, %v1346
      %1348 = vmatmul.f32.gmra.mxu0 %v1078
      %v1349 = vpop.f32.mrf.mxu0
      %v1350 = vadd.f32 %v1327, %v1349
      %1351 = vdwg.mxu0
      %1352 = vmatpush.msra.mxu0 %v1176
      %1353 = vmatpush.msra.mxu0 %v1174
      %1354 = vmatpush.msra.mxu0 %v1172
      %1355 = vmatpush.msra.mxu0 %v1170
      %1356 = vmatpush.msra.mxu0 %v1168
      %1357 = vmatpush.msra.mxu0 %v1166
      %1358 = vmatpush.msra.mxu0 %v1164
      %1359 = vmatpush.msra.mxu0 %v1162
      %1360 = vmatpush.msra.mxu0 %v1160
      %1361 = vmatpush.msra.mxu0 %v1158
      %1362 = vmatpush.msra.mxu0 %v1156
      %1363 = vmatpush.msra.mxu0 %v1154
      %1364 = vmatpush.msra.mxu0 %v1152
      %1365 = vmatpush.msra.mxu0 %v1150
      %1366 = vmatpush.msra.mxu0 %v1148
      %1367 = vmatpush.msra.mxu0 %v1146
      %1368 = vmatmul.f32.gmra.mxu0 %v1075
      %v1369 = vpop.f32.mrf.mxu0
      %v1370 = vadd.f32 %v1347, %v1369
      %1371 = vmatmul.f32.gmra.mxu0 %v1079
      %v1372 = vpop.f32.mrf.mxu0
      %v1373 = vadd.f32 %v1350, %v1372
      %1374 = vdwg.mxu0
      %1375 = vmatpush.msra.mxu0 0.0
      %1376 = vmatpush.msra.mxu0 0.0
      %1377 = vmatpush.msra.mxu0 0.0
      %1378 = vmatpush.msra.mxu0 0.0
      %1379 = vmatpush.msra.mxu0 %v1200
      %1380 = vmatpush.msra.mxu0 %v1198
      %1381 = vmatpush.msra.mxu0 %v1196
      %1382 = vmatpush.msra.mxu0 %v1194
      %1383 = vmatpush.msra.mxu0 %v1192
      %1384 = vmatpush.msra.mxu0 %v1190
      %1385 = vmatpush.msra.mxu0 %v1188
      %1386 = vmatpush.msra.mxu0 %v1186
      %1387 = vmatpush.msra.mxu0 %v1184
      %1388 = vmatpush.msra.mxu0 %v1182
      %1389 = vmatpush.msra.mxu0 %v1180
      %1390 = vmatpush.msra.mxu0 %v1178
      %1391 = vmatmul.f32.gmra.mxu0 %v1209
      %v1392 = vpop.f32.mrf.mxu0
      %v1393 = vadd.f32 %v1370, %v1392
      %1394 = vmatmul.f32.gmra.mxu0 %v1212
      %v1395 = vpop.f32.mrf.mxu0
      %v1396 = vadd.f32 %v1373, %v1395
      %1397 = vdwg.mxu0
      %v1398 = vmax.f32 %v1301, 0.0
      %v1399 = vmax.f32 %v1393, 0.0
      %v1400 = vmax.f32 %v1304, 0.0
      %v1401 = vmax.f32 %v1396, 0.0
      %v1403 = vsel %vm859, %v1071, 0
      %v1406 = vsel %vm859, %v1072, 0
      %1408 = vmatpush.msra.mxu0 0.0
      %1409 = vmatpush.msra.mxu0 0.0
      %1410 = vmatpush.msra.mxu0 0.0
      %1411 = vmatpush.msra.mxu0 0.0
      %1412 = vmatpush.msra.mxu0 0.0
      %1413 = vmatpush.msra.mxu0 0.0
      %1414 = vmatpush.msra.mxu0 0.0
      %1415 = vmatpush.msra.mxu0 0.0
      %1416 = vmatpush.msra.mxu0 0.0
      %1417 = vmatpush.msra.mxu0 0.0
      %1418 = vmatpush.msra.mxu0 0.0
      %1419 = vmatpush.msra.mxu0 0.0
      %1420 = vmatpush.msra.mxu0 0.0
      %1421 = vmatpush.msra.mxu0 0.0
      %1422 = vmatpush.msra.mxu0 %v1400
      %1423 = vmatpush.msra.mxu0 %v1398
      %1424 = vmatmul.f32.gmra.mxu0 %v1403
      %v1425 = vpop.f32.mrf.mxu0
      %v1426 = vadd.f32 %v1398, %v1425
      %1427 = vmatmul.f32.gmra.mxu0 %v1406
      %v1428 = vpop.f32.mrf.mxu0
      %v1429 = vadd.f32 %v1400, %v1428
      %1430 = vdwg.mxu0
      %1431 = vmatpush.msra.mxu0 0.0
      %1432 = vmatpush.msra.mxu0 0.0
      %1433 = vmatpush.msra.mxu0 0.0
      %1434 = vmatpush.msra.mxu0 0.0
      %1435 = vmatpush.msra.mxu0 0.0
      %1436 = vmatpush.msra.mxu0 0.0
      %1437 = vmatpush.msra.mxu0 0.0
      %1438 = vmatpush.msra.mxu0 0.0
      %1439 = vmatpush.msra.mxu0 0.0
      %1440 = vmatpush.msra.mxu0 0.0
      %1441 = vmatpush.msra.mxu0 0.0
      %1442 = vmatpush.msra.mxu0 0.0
      %1443 = vmatpush.msra.mxu0 0.0
      %1444 = vmatpush.msra.mxu0 0.0
      %1445 = vmatpush.msra.mxu0 %v1401
      %1446 = vmatpush.msra.mxu0 %v1399
      %1447 = vmatmul.f32.gmra.mxu0 %v1403
      %v1448 = vpop.f32.mrf.mxu0
      %v1449 = vadd.f32 %v1399, %v1448
      %1450 = vmatmul.f32.gmra.mxu0 %v1406
      %v1451 = vpop.f32.mrf.mxu0
      %v1452 = vadd.f32 %v1401, %v1451
      %1453 = vdwg.mxu0
      %v1454 = vld [vmem:[%s17] sm:$0xff]
      %v1455 = vld [vmem:[%s17 + $0x8] sm:$0xff]
      %v1456 = vld [vmem:[%s17 + $0x10] sm:$0xff]
      %v1457 = vld [vmem:[%s17 + $0x18] sm:$0xff]
      %v1458 = vld [vmem:[%s17 + $0x20] sm:$0xff]
      %v1459 = vld [vmem:[%s17 + $0x28] sm:$0xff]
      %v1460 = vld [vmem:[%s17 + $0x30] sm:$0xff]
      %v1461 = vld [vmem:[%s17 + $0x38] sm:$0xff]
      %v1462 = vld [vmem:[%s17 + $0x40] sm:$0xff]
      %v1463 = vld [vmem:[%s17 + $0x48] sm:$0xff]
      %v1464 = vld [vmem:[%s17 + $0x50] sm:$0xff]
      %v1465 = vld [vmem:[%s17 + $0x58] sm:$0xff]
      %v1466 = vld [vmem:[%s17 + $0x60] sm:$0xff]
      %v1467 = vld [vmem:[%s17 + $0x68] sm:$0xff]
      %v1468 = vld [vmem:[%s17 + $0x70] sm:$0xff]
      %v1469 = vld [vmem:[%s17 + $0x78] sm:$0xff]
      %v1470 = vld [vmem:[%s17 + $0x80] sm:$0xff]
      %v1471 = vld [vmem:[%s17 + $0x88] sm:$0xff]
      %v1472 = vld [vmem:[%s17 + $0x90] sm:$0xff]
      %v1473 = vld [vmem:[%s17 + $0x98] sm:$0xff]
      %v1474 = vld [vmem:[%s17 + $0xa0] sm:$0xff]
      %v1475 = vld [vmem:[%s17 + $0xa8] sm:$0xff]
      %v1476 = vld [vmem:[%s17 + $0xb0] sm:$0xff]
      %v1477 = vld [vmem:[%s17 + $0xb8] sm:$0xff]
      %v1478 = vld [vmem:[%s17 + $0xc0] sm:$0xff]
      %v1479 = vld [vmem:[%s18] sm:$0x1]
      %v1481 = vperm.slane %v1479, 0
      %vm1483 = vcmask 588800
      %v1485 = vsel %vm1483, %v1449, 0
      %v1488 = vsel %vm1483, %v1452, 0
      %1490 = vmatpush.msra.mxu0 %v1469
      %1491 = vmatpush.msra.mxu0 %v1468
      %1492 = vmatpush.msra.mxu0 %v1467
      %1493 = vmatpush.msra.mxu0 %v1466
      %1494 = vmatpush.msra.mxu0 %v1465
      %1495 = vmatpush.msra.mxu0 %v1464
      %1496 = vmatpush.msra.mxu0 %v1463
      %1497 = vmatpush.msra.mxu0 %v1462
      %1498 = vmatpush.msra.mxu0 %v1461
      %1499 = vmatpush.msra.mxu0 %v1460
      %1500 = vmatpush.msra.mxu0 %v1459
      %1501 = vmatpush.msra.mxu0 %v1458
      %1502 = vmatpush.msra.mxu0 %v1457
      %1503 = vmatpush.msra.mxu0 %v1456
      %1504 = vmatpush.msra.mxu0 %v1455
      %1505 = vmatpush.msra.mxu0 %v1454
      %1506 = vmatmul.f32.gmra.mxu0 %v1426
      %v1507 = vpop.f32.mrf.mxu0
      %v1508 = vadd.f32 %v1481, %v1507
      %1509 = vmatmul.f32.gmra.mxu0 %v1429
      %v1510 = vpop.f32.mrf.mxu0
      %v1511 = vadd.f32 %v1481, %v1510
      %1512 = vdwg.mxu0
      %1513 = vmatpush.msra.mxu0 0.0
      %1514 = vmatpush.msra.mxu0 0.0
      %1515 = vmatpush.msra.mxu0 0.0
      %1516 = vmatpush.msra.mxu0 0.0
      %1517 = vmatpush.msra.mxu0 0.0
      %1518 = vmatpush.msra.mxu0 0.0
      %1519 = vmatpush.msra.mxu0 0.0
      %1520 = vmatpush.msra.mxu0 %v1478
      %1521 = vmatpush.msra.mxu0 %v1477
      %1522 = vmatpush.msra.mxu0 %v1476
      %1523 = vmatpush.msra.mxu0 %v1475
      %1524 = vmatpush.msra.mxu0 %v1474
      %1525 = vmatpush.msra.mxu0 %v1473
      %1526 = vmatpush.msra.mxu0 %v1472
      %1527 = vmatpush.msra.mxu0 %v1471
      %1528 = vmatpush.msra.mxu0 %v1470
      %1529 = vmatmul.f32.gmra.mxu0 %v1485
      %v1530 = vpop.f32.mrf.mxu0
      %v1531 = vadd.f32 %v1508, %v1530
      %1532 = vmatmul.f32.gmra.mxu0 %v1488
      %v1533 = vpop.f32.mrf.mxu0
      %v1534 = vadd.f32 %v1511, %v1533
      %1535 = vdwg.mxu0
      %v1536 = vmax.f32 %v1531, 0.0
      %v1537 = vmax.f32 %v1534, 0.0
      %v1538 = vld [vmem:[%s19] sm:$0xff]
      %v1539 = vld [vmem:[%s19 + $0x8] sm:$0xff]
      %v1540 = vld [vmem:[%s19 + $0x10] sm:$0xff]
      %v1541 = vld [vmem:[%s19 + $0x18] sm:$0xff]
      %v1542 = vld [vmem:[%s19 + $0x20] sm:$0xff]
      %v1543 = vld [vmem:[%s19 + $0x28] sm:$0xff]
      %v1544 = vld [vmem:[%s19 + $0x30] sm:$0xff]
      %v1545 = vld [vmem:[%s19 + $0x38] sm:$0xff]
      %v1546 = vld [vmem:[%s19 + $0x40] sm:$0xff]
      %v1547 = vld [vmem:[%s19 + $0x48] sm:$0xff]
      %v1548 = vld [vmem:[%s19 + $0x50] sm:$0xff]
      %v1549 = vld [vmem:[%s19 + $0x58] sm:$0xff]
      %v1550 = vld [vmem:[%s19 + $0x60] sm:$0xf]
      %v1551 = vld [vmem:[%s20] sm:$0x1]
      %v1553 = vperm.slane %v1551, 0
      %vm1555 = vcmask 818176
      %v1557 = vsel %vm1555, %v1536, 0
      %v1560 = vsel %vm1555, %v1537, 0
      %vm1562 = vcmask 1043456
      %v1564 = vsel %vm1562, %v1550, 0
      %1566 = vmatpush.msra.mxu0 0.0
      %1567 = vmatpush.msra.mxu0 0.0
      %1568 = vmatpush.msra.mxu0 0.0
      %1569 = vmatpush.msra.mxu0 %v1564
      %1570 = vmatpush.msra.mxu0 %v1549
      %1571 = vmatpush.msra.mxu0 %v1548
      %1572 = vmatpush.msra.mxu0 %v1547
      %1573 = vmatpush.msra.mxu0 %v1546
      %1574 = vmatpush.msra.mxu0 %v1545
      %1575 = vmatpush.msra.mxu0 %v1544
      %1576 = vmatpush.msra.mxu0 %v1543
      %1577 = vmatpush.msra.mxu0 %v1542
      %1578 = vmatpush.msra.mxu0 %v1541
      %1579 = vmatpush.msra.mxu0 %v1540
      %1580 = vmatpush.msra.mxu0 %v1539
      %1581 = vmatpush.msra.mxu0 %v1538
      %1582 = vmatmul.f32.gmra.mxu0 %v1557
      %v1583 = vpop.f32.mrf.mxu0
      %v1584 = vadd.f32 %v1553, %v1583
      %1585 = vmatmul.f32.gmra.mxu0 %v1560
      %v1586 = vpop.f32.mrf.mxu0
      %v1587 = vadd.f32 %v1553, %v1586
      %1588 = vdwg.mxu0
      %v1589 = vtanh.pop %v1584
      %v1590 = vtanh.pop %v1587
      %v1591 = vld [vmem:[%s798] sm:$0x3]
      %v1593 = vsel %vm859, %v1591, 0
      %1595 = vmatpush.msra.mxu0 0.0
      %1596 = vmatpush.msra.mxu0 0.0
      %1597 = vmatpush.msra.mxu0 0.0
      %1598 = vmatpush.msra.mxu0 0.0
      %1599 = vmatpush.msra.mxu0 0.0
      %1600 = vmatpush.msra.mxu0 0.0
      %1601 = vmatpush.msra.mxu0 0.0
      %1602 = vmatpush.msra.mxu0 0.0
      %1603 = vmatpush.msra.mxu0 0.0
      %1604 = vmatpush.msra.mxu0 0.0
      %1605 = vmatpush.msra.mxu0 0.0
      %1606 = vmatpush.msra.mxu0 0.0
      %1607 = vmatpush.msra.mxu0 0.0
      %1608 = vmatpush.msra.mxu0 0.0
      %1609 = vmatpush.msra.mxu0 %v1590
      %1610 = vmatpush.msra.mxu0 %v1589
      %1611 = vmatmul.f32.gmra.mxu0 %v1593
      %v1612 = vpop.f32.mrf.mxu0
      %v1613 = vadd.f32 0.0, %v1612
      %1614 = vdwg.mxu0
      %1615 = vst.msk [vmem:[%s806] sm:$0x3] %vm1069, %v1613
      %p1616 = scmp.lt.s32.totalorder %s34, 1
      %s1617 = scalar_select %p1616, %s34, 1
      %s1618 = smul.addr %s1617, 2
      %s1619 = scalar_lea.vmem %s21, %s1618
      %p1620 = scmp.lt.s32.totalorder %s34, 1
      %s1621 = scalar_select %p1620, %s34, 1
      %s1622 = smul.addr %s1621, 2
      %s1623 = scalar_lea.vmem %s22, %s1622
      // Predicated region
      $region105: #{gcn_forward.1} parent=103 // pred_check
        %p1624 = pneg %p528
      $region106: #{gcn_forward.1} parent=103 // pred_check_branch
        %1626 = sbr.rel (%p1624) target = $region108
      $region107: #{gcn_forward.1} parent=103 // pred_region
        _
      $region108: #{gcn_forward.1} parent=103 // pred_fallthru
        _
      // Predicated region
      $region109: #{gcn_forward.1} parent=103 // pred_check
        %p1627 = pneg %p554
      $region110: #{gcn_forward.1} parent=103 // pred_check_branch
        %1629 = sbr.rel (%p1627) target = $region112
      $region111: #{gcn_forward.1} parent=103 // pred_region
        _
      $region112: #{gcn_forward.1} parent=103 // pred_fallthru
        _
    $region104: #{gcn_forward.1} parent=5 // pred_fallthru
      _
    %p1630 = scmp.le.s32.totalorder 2, %s29
    // Predicated region
    $region113: #{gcn_forward.1} parent=5 // pred_check
      %p1631 = pneg %p1630
    $region114: #{gcn_forward.1} parent=5 // pred_check_branch
      %1633 = sbr.rel (%p1631) target = $region116
    $region115: #{gcn_forward.1} parent=5 // pred_region
      %s1634 = ssub.s32 %s29, 2
      // Predicated region
      $region117: #{gcn_forward.1} parent=115 // pred_check
        %p1635 = pneg %p534
      $region118: #{gcn_forward.1} parent=115 // pred_check_branch
        %1637 = sbr.rel (%p1635) target = $region120
      $region119: #{gcn_forward.1} parent=115 // pred_region
        %p1638 = scmp.lt.s32.totalorder %s35, 1
        %s1639 = scalar_select %p1638, %s35, 1
        %s1640 = smul.addr %s1639, 2
        %s1641 = scalar_lea.vmem %s21, %s1640
      $region120: #{gcn_forward.1} parent=115 // pred_fallthru
        _
      // Predicated region
      $region121: #{gcn_forward.1} parent=115 // pred_check
        %p1642 = pneg %p560
      $region122: #{gcn_forward.1} parent=115 // pred_check_branch
        %1644 = sbr.rel (%p1642) target = $region124
      $region123: #{gcn_forward.1} parent=115 // pred_region
        %p1645 = scmp.lt.s32.totalorder %s35, 1
        %s1646 = scalar_select %p1645, %s35, 1
        %s1647 = smul.addr %s1646, 2
        %s1648 = scalar_lea.vmem %s22, %s1647
      $region124: #{gcn_forward.1} parent=115 // pred_fallthru
        _
    $region116: #{gcn_forward.1} parent=5 // pred_fallthru
      _
  $region6: #{gcn_forward.1} parent=0 // loop_footer
    %s33 = sadd.s32 1, %s29
  $region7: #{gcn_forward.1} parent=0 // loop_footer_branch
    %28 = sbr.rel target = $region3
  $region8: #{gcn_forward.1} parent=0 // loop_exit
    _

</llo_original>
